<compile_context>
chip_gen: v7x
topology: tpu7x:2x2x1
jax: 0.10.0
libtpu: 0.0.40
codegen_flags: <defaults>
</compile_context>

<pallas_src>
import numpy as np

import jax
import jax.numpy as jnp
from jax.experimental import pallas as pl
from jax.experimental.pallas import tpu as pltpu


# ----------------------------------------------------------------------------
# BlockSpec helper: full-array blocks on a trivial grid (shapes here are tiny;
# block_shape == full array dims satisfies the (8,128) tiling rule).
# ----------------------------------------------------------------------------
def _spec(shape):
    nd = len(shape)
    return pl.BlockSpec(shape, lambda i, _nd=nd: (0,) * _nd)


# ----------------------------------------------------------------------------
# Fused head kernel.  Computes, in one launch:
#   rsample (tree):  t_mean = xt@Wtm+b ; t_logvar = -|xt@Wtv+b|
#   rsample (mol):   g_mean, g_logvar analogously
#   kl_div = tree_kl + mol_kl  (uses e = exp(0.5*logvar); exp(logvar) = e*e,
#                               saving one EUP transcendental per element)
#   z_tree = t_mean + e_t*eps_t ; z_mol = g_mean + e_g*eps_m   (stay in VMEM)
#   propNN: h = tanh(z_tree@W1a + z_mol@W1b + b1); pred = h@W2 + b2
#           (no in-kernel concat: two partial dots on the halves of W1)
#   prop_loss = mean((pred - label)^2)
#   assm: proj = z_mol@Wa (project the B *unique* rows BEFORE the "gather"),
#         S = proj @ cand^T (B, Ncand); per-candidate scores routed with a
#         batch-index one-hot mask (no gather), kept lane-dense (1, Ncand).
#   per-node masked logsumexp CE + tie-counting accuracy on (n_nodes, Ncand)
#   total = assm_loss + beta*kl_div + prop_loss  (word/topo losses are 0 here)
#   All scalar results go out through ONE lane-dense (1, 8) f32 vector.
#
# TODO(synk): nn.Dropout(p) inside propNN at training time is omitted
#             (identity / eval mode).
# ----------------------------------------------------------------------------
def _fused_head_kernel(
    x_tree_ref, x_mol_ref,
    wtm_ref, btm_ref, wtv_ref, btv_ref,
    wgm_ref, bgm_ref, wgv_ref, bgv_ref,
    eps_t_ref, eps_m_ref,
    w1t_ref, w1m_ref, b1_ref, w2_ref, b2_ref, ylab_ref,
    wa_ref, cand_t_ref, bidx_ref, segid_ref, lblg_ref,
    beta_ref,
    out_ref,
):
    f32 = jnp.float32
    bf16 = jnp.bfloat16

    xt = x_tree_ref[...].astype(bf16)          # (B, H) MXU operands in bf16
    xm = x_mol_ref[...].astype(bf16)
    B = xt.shape[0]
    inv_b = 1.0 / float(B)

    # ---- rsample, both branches in one launch -------------------------------
    t_mean = jnp.dot(xt, wtm_ref[...], preferred_element_type=f32) + btm_ref[...]
    t_lvar = -jnp.abs(
        jnp.dot(xt, wtv_ref[...], preferred_element_type=f32) + btv_ref[...])
    g_mean = jnp.dot(xm, wgm_ref[...], preferred_element_type=f32) + bgm_ref[...]
    g_lvar = -jnp.abs(
        jnp.dot(xm, wgv_ref[...], preferred_element_type=f32) + bgv_ref[...])

    e_t = jnp.exp(0.5 * t_lvar)                # exp(logvar) == e*e
    e_g = jnp.exp(0.5 * g_lvar)

    tree_kl = -0.5 * jnp.sum(1.0 + t_lvar - t_mean * t_mean - e_t * e_t) * inv_b
    mol_kl = -0.5 * jnp.sum(1.0 + g_lvar - g_mean * g_mean - e_g * e_g) * inv_b
    kl_div = tree_kl + mol_kl

    z_tree = t_mean + e_t * eps_t_ref[...]     # (B, L), never leaves VMEM
    z_mol = g_mean + e_g * eps_m_ref[...]      # (B, L)

    # ---- propNN + MSE (no concat: partial dots on the halves of W1) ---------
    h = jnp.tanh(
        jnp.dot(z_tree.astype(bf16), w1t_ref[...], preferred_element_type=f32)
        + jnp.dot(z_mol.astype(bf16), w1m_ref[...], preferred_element_type=f32)
        + b1_ref[...])
    pred = jnp.dot(h.astype(bf16), w2_ref[...], preferred_element_type=f32) + b2_ref[...]
    diff = pred - ylab_ref[...]
    prop_loss = jnp.mean(diff * diff)

    # ---- assm: project the B unique rows, then score every candidate --------
    proj = jnp.dot(z_mol.astype(bf16), wa_ref[...], preferred_element_type=f32)   # (B, H)
    S = jnp.dot(proj.astype(bf16), cand_t_ref[...], preferred_element_type=f32)   # (B, Ncand)
    ncand = S.shape[1]
    brow = jax.lax.broadcasted_iota(jnp.int32, (B, ncand), 0)
    # route score rows by candidate->molecule index with a one-hot mask (no gather)
    scores = jnp.sum(jnp.where(bidx_ref[...] == brow, S, 0.0),
                     axis=0, keepdims=True)                                        # (1, Ncand)

    # ---- per-node masked cross-entropy + accuracy (vectorized, lane-dense) --
    n_nodes = lblg_ref.shape[0]
    node_iota = jax.lax.broadcasted_iota(jnp.int32, (n_nodes, ncand), 0)
    cand_iota = jax.lax.broadcasted_iota(jnp.int32, (n_nodes, ncand), 1)
    seg_mask = segid_ref[...] == node_iota                     # (n_nodes, Ncand)
    neg = jnp.float32(-1e30)
    M = jnp.where(seg_mask, scores, neg)
    m = jnp.max(M, axis=1, keepdims=True)                      # (n_nodes, 1)
    p = jnp.where(seg_mask, jnp.exp(M - m), 0.0)
    lse = m + jnp.log(jnp.sum(p, axis=1, keepdims=True))       # (n_nodes, 1)
    lbl_onehot = cand_iota == lblg_ref[...]                    # label position per node
    ls = jnp.sum(jnp.where(lbl_onehot, scores, 0.0), axis=1, keepdims=True)
    assm_loss = jnp.sum(lse - ls) * inv_b
    # Reference uses `score[label] >= max(score)` (ties count as correct).
    assm_acc = jnp.sum((ls >= m).astype(f32)) / float(n_nodes)

    # ---- total loss (word_loss + topo_loss are zero in this head) ------------
    # beta kept as a (1,1) broadcast operand (no scalar extraction from VMEM).
    total = assm_loss + beta_ref[...] * kl_div + prop_loss     # (1, 1)

    # ---- single lane-dense scalar output vector ------------------------------
    lane = jax.lax.broadcasted_iota(jnp.int32, (1, 8), 1)
    outv = (jnp.where(lane == 0, total, 0.0)
            + jnp.where(lane == 1, kl_div, 0.0)
            + jnp.where(lane == 2, prop_loss, 0.0)
            + jnp.where(lane == 3, assm_loss, 0.0)
            + jnp.where(lane == 4, assm_acc, 0.0))
    out_ref[...] = outv.astype(f32)


def _fused_head(params, x_tree, x_mol, x_prop, eps_tree, eps_mol,
                cand_vecs, batch_idx, seg_id, label_global, beta):
    # Lane-dense scoring: candidates live on the lane axis, (H, Ncand).  The
    # transpose+cast fuses into the same jitted executable as the pallas_call.
    cand_t = cand_vecs.T.astype(jnp.bfloat16)
    beta_arr = jnp.asarray(beta, jnp.float32).reshape(1, 1)
    inputs = [
        x_tree, x_mol,
        params["wtm"], params["btm"], params["wtv"], params["btv"],
        params["wgm"], params["bgm"], params["wgv"], params["bgv"],
        eps_tree, eps_mol,
        params["w1t"], params["w1m"], params["b1"], params["w2"], params["b2"], x_prop,
        params["wa"], cand_t, batch_idx, seg_id, label_global,
        beta_arr,
    ]
    return pl.pallas_call(
        _fused_head_kernel,
        grid=(1,),
        in_specs=[_spec(x.shape) for x in inputs],
        out_specs=_spec((1, 8)),
        out_shape=jax.ShapeDtypeStruct((1, 8), jnp.float32),
        compiler_params=pltpu.CompilerParams(dimension_semantics=("arbitrary",)),
    )(*inputs)


fused_head = jax.jit(_fused_head)


# ----------------------------------------------------------------------------
# JTpropVAE head (forward pass over the dense compute)
# ----------------------------------------------------------------------------
class JTpropVAEHead:
    def __init__(self, hidden_size, latent_size, key):
        self.hidden_size = H = hidden_size
        self.latent_size = L = latent_size // 2     # matches module __init__
        ks = jax.random.split(key, 8)
        s = 0.1
        bf = jnp.bfloat16
        # PyTorch nn.Linear convention: weight (out, in), bias (out,).
        # Pre-transpose once; matmul operands kept in bf16, biases/elementwise f32.
        t_mean_w = jax.random.normal(ks[0], (L, H), jnp.float32) * s
        t_var_w = jax.random.normal(ks[1], (L, H), jnp.float32) * s
        g_mean_w = jax.random.normal(ks[2], (L, H), jnp.float32) * s
        g_var_w = jax.random.normal(ks[3], (L, H), jnp.float32) * s
        a_assm_w = jax.random.normal(ks[4], (H, L), jnp.float32) * s   # no bias
        prop_w1 = jax.random.normal(ks[5], (H, 2 * L), jnp.float32) * s
        prop_w2 = jax.random.normal(ks[6], (2, H), jnp.float32) * s
        self.params = dict(
            wtm=t_mean_w.T.astype(bf), btm=jnp.zeros((1, L), jnp.float32),
            wtv=t_var_w.T.astype(bf), btv=jnp.zeros((1, L), jnp.float32),
            wgm=g_mean_w.T.astype(bf), bgm=jnp.zeros((1, L), jnp.float32),
            wgv=g_var_w.T.astype(bf), bgv=jnp.zeros((1, L), jnp.float32),
            w1t=prop_w1.T[:L, :].astype(bf),      # z_tree half of propNN layer 1
            w1m=prop_w1.T[L:, :].astype(bf),      # z_mol half of propNN layer 1
            b1=jnp.zeros((1, H), jnp.float32),
            w2=prop_w2.T.astype(bf),
            b2=jnp.zeros((1, 2), jnp.float32),
            wa=a_assm_w.T.astype(bf),             # (L, H)
        )

    def forward(self, x_tree_vecs, x_mol_vecs, x_prop, cand_vecs, batch_idx,
                seg_ncand, seg_labels, beta, eps_tree, eps_mol):
        ncand = int(cand_vecs.shape[0])
        n_nodes = len(seg_ncand)

        # Host-side segment bookkeeping -> dense int32 arrays.  These are pure
        # data (not baked into the trace): changing candidate counts / labels
        # does not retrace as long as array shapes stay fixed.
        seg_id = np.zeros((1, ncand), np.int32)
        label_global = np.zeros((n_nodes, 1), np.int32)
        off = 0
        for n, (nc, lb) in enumerate(zip(seg_ncand, seg_labels)):
            seg_id[0, off:off + nc] = n
            label_global[n, 0] = off + lb
            off += nc
        bidx = jnp.asarray(batch_idx, jnp.int32).reshape(1, ncand)

        out = fused_head(self.params, x_tree_vecs, x_mol_vecs, x_prop,
                         eps_tree, eps_mol, cand_vecs, bidx,
                         jnp.asarray(seg_id), jnp.asarray(label_global),
                         jnp.asarray(beta, jnp.float32))
        total = out[0, 0]
        kl_div = out[0, 1]
        prop_loss = out[0, 2]
        assm_acc = out[0, 4]

        # TODO(synk): JTNNDecoder word/topo losses + accuracies require
        # tree-structured GRU decoding over molecular junction trees
        # (data-dependent graph recursion; no Pallas equivalent here).
        word_acc = jnp.float32(0.0)
        topo_acc = jnp.float32(0.0)

        return total, kl_div, word_acc, topo_acc, assm_acc, prop_loss


if __name__ == "__main__":
    B, H, LATENT = 4, 32, 16          # latent_size arg = 16 -> internal L = 8
    L = LATENT // 2
    N_NODES, NCAND_EACH = 3, 4
    NCAND = N_NODES * NCAND_EACH

    key = jax.random.PRNGKey(0)
    k_param, k_tree, k_mol, k_prop, k_cand, k_et, k_em = jax.random.split(key, 7)

    model = JTpropVAEHead(H, LATENT, k_param)

    # Synthetic encoder outputs (stand-ins for JTNNEncoder / MPN / JTMPN).
    x_tree_vecs = jax.random.normal(k_tree, (B, H), jnp.float32)
    x_mol_vecs = jax.random.normal(k_mol, (B, H), jnp.float32)
    x_prop = jax.random.normal(k_prop, (B, 2), jnp.float32)
    cand_vecs = jax.random.normal(k_cand, (NCAND, H), jnp.float32)
    eps_tree = jax.random.normal(k_et, (B, L), jnp.float32)
    eps_mol = jax.random.normal(k_em, (B, L), jnp.float32)

    # Each candidate row belongs to one molecule in the batch.
    batch_idx = jnp.array([0, 0, 0, 0, 1, 1, 1, 1, 2, 2, 2, 2], dtype=jnp.int32)
    seg_ncand = [NCAND_EACH, NCAND_EACH, NCAND_EACH]
    seg_labels = [0, 1, 2]
    beta = 0.5

    results = model.forward(
        x_tree_vecs, x_mol_vecs, x_prop, cand_vecs, batch_idx,
        seg_ncand, seg_labels, beta, eps_tree, eps_mol)

    jax.block_until_ready(results)
    print("KERNEL_OK")
</pallas_src>

<mosaic_0001>
module attributes {stable_mosaic.version = 11 : i64} {
  func.func @_fused_head_kernel(%arg0: i32, %arg1: memref<4x32xf32, #tpu.memory_space<vmem>>, %arg2: memref<4x32xf32, #tpu.memory_space<vmem>>, %arg3: memref<32x8xbf16, #tpu.memory_space<vmem>>, %arg4: memref<1x8xf32, #tpu.memory_space<vmem>>, %arg5: memref<32x8xbf16, #tpu.memory_space<vmem>>, %arg6: memref<1x8xf32, #tpu.memory_space<vmem>>, %arg7: memref<32x8xbf16, #tpu.memory_space<vmem>>, %arg8: memref<1x8xf32, #tpu.memory_space<vmem>>, %arg9: memref<32x8xbf16, #tpu.memory_space<vmem>>, %arg10: memref<1x8xf32, #tpu.memory_space<vmem>>, %arg11: memref<4x8xf32, #tpu.memory_space<vmem>>, %arg12: memref<4x8xf32, #tpu.memory_space<vmem>>, %arg13: memref<8x32xbf16, #tpu.memory_space<vmem>>, %arg14: memref<8x32xbf16, #tpu.memory_space<vmem>>, %arg15: memref<1x32xf32, #tpu.memory_space<vmem>>, %arg16: memref<32x2xbf16, #tpu.memory_space<vmem>>, %arg17: memref<1x2xf32, #tpu.memory_space<vmem>>, %arg18: memref<4x2xf32, #tpu.memory_space<vmem>>, %arg19: memref<8x32xbf16, #tpu.memory_space<vmem>>, %arg20: memref<32x12xbf16, #tpu.memory_space<vmem>>, %arg21: memref<1x12xi32, #tpu.memory_space<vmem>>, %arg22: memref<1x12xi32, #tpu.memory_space<vmem>>, %arg23: memref<3x1xi32, #tpu.memory_space<vmem>>, %arg24: memref<1x1xf32, #tpu.memory_space<vmem>>, %arg25: memref<1x8xf32, #tpu.memory_space<vmem>>) attributes {dimension_semantics = [#tpu.dimension_semantics<arbitrary>], iteration_bounds = array<i64: 1>, scalar_prefetch = 0 : i64, scratch_operands = 0 : i64, tpu.core_type = #tpu.core_type<tc>, window_params = [{pipeline_mode = #tpu.pipeline_mode<synchronous>, transform_indices = @transform_0, window_bounds = array<i64: 4, 32>}, {pipeline_mode = #tpu.pipeline_mode<synchronous>, transform_indices = @transform_1, window_bounds = array<i64: 4, 32>}, {pipeline_mode = #tpu.pipeline_mode<synchronous>, transform_indices = @transform_2, window_bounds = array<i64: 32, 8>}, {pipeline_mode = #tpu.pipeline_mode<synchronous>, transform_indices = @transform_3, window_bounds = array<i64: 1, 8>}, {pipeline_mode = #tpu.pipeline_mode<synchronous>, transform_indices = @transform_4, window_bounds = array<i64: 32, 8>}, {pipeline_mode = #tpu.pipeline_mode<synchronous>, transform_indices = @transform_5, window_bounds = array<i64: 1, 8>}, {pipeline_mode = #tpu.pipeline_mode<synchronous>, transform_indices = @transform_6, window_bounds = array<i64: 32, 8>}, {pipeline_mode = #tpu.pipeline_mode<synchronous>, transform_indices = @transform_7, window_bounds = array<i64: 1, 8>}, {pipeline_mode = #tpu.pipeline_mode<synchronous>, transform_indices = @transform_8, window_bounds = array<i64: 32, 8>}, {pipeline_mode = #tpu.pipeline_mode<synchronous>, transform_indices = @transform_9, window_bounds = array<i64: 1, 8>}, {pipeline_mode = #tpu.pipeline_mode<synchronous>, transform_indices = @transform_10, window_bounds = array<i64: 4, 8>}, {pipeline_mode = #tpu.pipeline_mode<synchronous>, transform_indices = @transform_11, window_bounds = array<i64: 4, 8>}, {pipeline_mode = #tpu.pipeline_mode<synchronous>, transform_indices = @transform_12, window_bounds = array<i64: 8, 32>}, {pipeline_mode = #tpu.pipeline_mode<synchronous>, transform_indices = @transform_13, window_bounds = array<i64: 8, 32>}, {pipeline_mode = #tpu.pipeline_mode<synchronous>, transform_indices = @transform_14, window_bounds = array<i64: 1, 32>}, {pipeline_mode = #tpu.pipeline_mode<synchronous>, transform_indices = @transform_15, window_bounds = array<i64: 32, 2>}, {pipeline_mode = #tpu.pipeline_mode<synchronous>, transform_indices = @transform_16, window_bounds = array<i64: 1, 2>}, {pipeline_mode = #tpu.pipeline_mode<synchronous>, transform_indices = @transform_17, window_bounds = array<i64: 4, 2>}, {pipeline_mode = #tpu.pipeline_mode<synchronous>, transform_indices = @transform_18, window_bounds = array<i64: 8, 32>}, {pipeline_mode = #tpu.pipeline_mode<synchronous>, transform_indices = @transform_19, window_bounds = array<i64: 32, 12>}, {pipeline_mode = #tpu.pipeline_mode<synchronous>, transform_indices = @transform_20, window_bounds = array<i64: 1, 12>}, {pipeline_mode = #tpu.pipeline_mode<synchronous>, transform_indices = @transform_21, window_bounds = array<i64: 1, 12>}, {pipeline_mode = #tpu.pipeline_mode<synchronous>, transform_indices = @transform_22, window_bounds = array<i64: 3, 1>}, {pipeline_mode = #tpu.pipeline_mode<synchronous>, transform_indices = @transform_23, window_bounds = array<i64: 1, 1>}, {pipeline_mode = #tpu.pipeline_mode<synchronous>, transform_indices = @transform_24, window_bounds = array<i64: 1, 8>}]} {
    %c0 = arith.constant 0 : index
    %c0_0 = arith.constant 0 : index
    %0 = vector.load %arg1[%c0, %c0_0] : memref<4x32xf32, #tpu.memory_space<vmem>>, vector<4x32xf32>
    %1 = arith.truncf %0 : vector<4x32xf32> to vector<4x32xbf16>
    %c0_1 = arith.constant 0 : index
    %c0_2 = arith.constant 0 : index
    %2 = vector.load %arg2[%c0_1, %c0_2] : memref<4x32xf32, #tpu.memory_space<vmem>>, vector<4x32xf32>
    %3 = arith.truncf %2 : vector<4x32xf32> to vector<4x32xbf16>
    %c0_3 = arith.constant 0 : index
    %c0_4 = arith.constant 0 : index
    %4 = vector.load %arg3[%c0_3, %c0_4] : memref<32x8xbf16, #tpu.memory_space<vmem>>, vector<32x8xbf16>
    %cst = arith.constant dense<0.000000e+00> : vector<4x8xf32>
    %5 = tpu.matmul %1, %4, %cst {dimension_numbers = #tpu.dot_dimension_numbers<[1], [0], [0], [1], [0, 0, 1, 1], [], []>} : vector<4x32xbf16>, vector<32x8xbf16>, vector<4x8xf32> -> vector<4x8xf32>
    %c0_5 = arith.constant 0 : index
    %c0_6 = arith.constant 0 : index
    %6 = vector.load %arg4[%c0_5, %c0_6] : memref<1x8xf32, #tpu.memory_space<vmem>>, vector<1x8xf32>
    %7 = vector.broadcast %6 : vector<1x8xf32> to vector<4x8xf32>
    %8 = arith.addf %5, %7 : vector<4x8xf32>
    %c0_7 = arith.constant 0 : index
    %c0_8 = arith.constant 0 : index
    %9 = vector.load %arg5[%c0_7, %c0_8] : memref<32x8xbf16, #tpu.memory_space<vmem>>, vector<32x8xbf16>
    %cst_9 = arith.constant dense<0.000000e+00> : vector<4x8xf32>
    %10 = tpu.matmul %1, %9, %cst_9 {dimension_numbers = #tpu.dot_dimension_numbers<[1], [0], [0], [1], [0, 0, 1, 1], [], []>} : vector<4x32xbf16>, vector<32x8xbf16>, vector<4x8xf32> -> vector<4x8xf32>
    %c0_10 = arith.constant 0 : index
    %c0_11 = arith.constant 0 : index
    %11 = vector.load %arg6[%c0_10, %c0_11] : memref<1x8xf32, #tpu.memory_space<vmem>>, vector<1x8xf32>
    %12 = vector.broadcast %11 : vector<1x8xf32> to vector<4x8xf32>
    %13 = arith.addf %10, %12 : vector<4x8xf32>
    %14 = math.absf %13 : vector<4x8xf32>
    %cst_12 = arith.constant 0.000000e+00 : f32
    %15 = vector.broadcast %cst_12 : f32 to vector<4x8xf32>
    %16 = arith.subf %15, %14 : vector<4x8xf32>
    %c0_13 = arith.constant 0 : index
    %c0_14 = arith.constant 0 : index
    %17 = vector.load %arg7[%c0_13, %c0_14] : memref<32x8xbf16, #tpu.memory_space<vmem>>, vector<32x8xbf16>
    %cst_15 = arith.constant dense<0.000000e+00> : vector<4x8xf32>
    %18 = tpu.matmul %3, %17, %cst_15 {dimension_numbers = #tpu.dot_dimension_numbers<[1], [0], [0], [1], [0, 0, 1, 1], [], []>} : vector<4x32xbf16>, vector<32x8xbf16>, vector<4x8xf32> -> vector<4x8xf32>
    %c0_16 = arith.constant 0 : index
    %c0_17 = arith.constant 0 : index
    %19 = vector.load %arg8[%c0_16, %c0_17] : memref<1x8xf32, #tpu.memory_space<vmem>>, vector<1x8xf32>
    %20 = vector.broadcast %19 : vector<1x8xf32> to vector<4x8xf32>
    %21 = arith.addf %18, %20 : vector<4x8xf32>
    %c0_18 = arith.constant 0 : index
    %c0_19 = arith.constant 0 : index
    %22 = vector.load %arg9[%c0_18, %c0_19] : memref<32x8xbf16, #tpu.memory_space<vmem>>, vector<32x8xbf16>
    %cst_20 = arith.constant dense<0.000000e+00> : vector<4x8xf32>
    %23 = tpu.matmul %3, %22, %cst_20 {dimension_numbers = #tpu.dot_dimension_numbers<[1], [0], [0], [1], [0, 0, 1, 1], [], []>} : vector<4x32xbf16>, vector<32x8xbf16>, vector<4x8xf32> -> vector<4x8xf32>
    %c0_21 = arith.constant 0 : index
    %c0_22 = arith.constant 0 : index
    %24 = vector.load %arg10[%c0_21, %c0_22] : memref<1x8xf32, #tpu.memory_space<vmem>>, vector<1x8xf32>
    %25 = vector.broadcast %24 : vector<1x8xf32> to vector<4x8xf32>
    %26 = arith.addf %23, %25 : vector<4x8xf32>
    %27 = math.absf %26 : vector<4x8xf32>
    %cst_23 = arith.constant 0.000000e+00 : f32
    %28 = vector.broadcast %cst_23 : f32 to vector<4x8xf32>
    %29 = arith.subf %28, %27 : vector<4x8xf32>
    %cst_24 = arith.constant 5.000000e-01 : f32
    %30 = vector.broadcast %cst_24 : f32 to vector<4x8xf32>
    %31 = arith.mulf %30, %16 : vector<4x8xf32>
    %32 = math.exp %31 : vector<4x8xf32>
    %cst_25 = arith.constant 5.000000e-01 : f32
    %33 = vector.broadcast %cst_25 : f32 to vector<4x8xf32>
    %34 = arith.mulf %33, %29 : vector<4x8xf32>
    %35 = math.exp %34 : vector<4x8xf32>
    %cst_26 = arith.constant 1.000000e+00 : f32
    %36 = vector.broadcast %cst_26 : f32 to vector<4x8xf32>
    %37 = arith.addf %36, %16 : vector<4x8xf32>
    %38 = arith.mulf %8, %8 : vector<4x8xf32>
    %39 = arith.subf %37, %38 : vector<4x8xf32>
    %40 = arith.mulf %32, %32 : vector<4x8xf32>
    %41 = arith.subf %39, %40 : vector<4x8xf32>
    %42 = vector.shape_cast %41 : vector<4x8xf32> to vector<1x4x8xf32>
    %cst_27 = arith.constant dense<0.000000e+00> : vector<1xf32>
    %43 = vector.multi_reduction <add>, %42, %cst_27 [1, 2] : vector<1x4x8xf32> to vector<1xf32>
    %44 = vector.shape_cast %43 : vector<1xf32> to vector<1x1x1xf32>
    %45 = vector.extract %44[0, 0, 0] : f32 from vector<1x1x1xf32>
    %cst_28 = arith.constant -5.000000e-01 : f32
    %46 = arith.mulf %cst_28, %45 : f32
    %cst_29 = arith.constant 2.500000e-01 : f32
    %47 = arith.mulf %46, %cst_29 : f32
    %cst_30 = arith.constant 1.000000e+00 : f32
    %48 = vector.broadcast %cst_30 : f32 to vector<4x8xf32>
    %49 = arith.addf %48, %29 : vector<4x8xf32>
    %50 = arith.mulf %21, %21 : vector<4x8xf32>
    %51 = arith.subf %49, %50 : vector<4x8xf32>
    %52 = arith.mulf %35, %35 : vector<4x8xf32>
    %53 = arith.subf %51, %52 : vector<4x8xf32>
    %54 = vector.shape_cast %53 : vector<4x8xf32> to vector<1x4x8xf32>
    %cst_31 = arith.constant dense<0.000000e+00> : vector<1xf32>
    %55 = vector.multi_reduction <add>, %54, %cst_31 [1, 2] : vector<1x4x8xf32> to vector<1xf32>
    %56 = vector.shape_cast %55 : vector<1xf32> to vector<1x1x1xf32>
    %57 = vector.extract %56[0, 0, 0] : f32 from vector<1x1x1xf32>
    %cst_32 = arith.constant -5.000000e-01 : f32
    %58 = arith.mulf %cst_32, %57 : f32
    %cst_33 = arith.constant 2.500000e-01 : f32
    %59 = arith.mulf %58, %cst_33 : f32
    %60 = arith.addf %47, %59 : f32
    %c0_34 = arith.constant 0 : index
    %c0_35 = arith.constant 0 : index
    %61 = vector.load %arg11[%c0_34, %c0_35] : memref<4x8xf32, #tpu.memory_space<vmem>>, vector<4x8xf32>
    %62 = arith.mulf %32, %61 : vector<4x8xf32>
    %63 = arith.addf %8, %62 : vector<4x8xf32>
    %c0_36 = arith.constant 0 : index
    %c0_37 = arith.constant 0 : index
    %64 = vector.load %arg12[%c0_36, %c0_37] : memref<4x8xf32, #tpu.memory_space<vmem>>, vector<4x8xf32>
    %65 = arith.mulf %35, %64 : vector<4x8xf32>
    %66 = arith.addf %21, %65 : vector<4x8xf32>
    %67 = arith.truncf %63 : vector<4x8xf32> to vector<4x8xbf16>
    %c0_38 = arith.constant 0 : index
    %c0_39 = arith.constant 0 : index
    %68 = vector.load %arg13[%c0_38, %c0_39] : memref<8x32xbf16, #tpu.memory_space<vmem>>, vector<8x32xbf16>
    %cst_40 = arith.constant dense<0.000000e+00> : vector<4x32xf32>
    %69 = tpu.matmul %67, %68, %cst_40 {dimension_numbers = #tpu.dot_dimension_numbers<[1], [0], [0], [1], [0, 0, 1, 1], [], []>} : vector<4x8xbf16>, vector<8x32xbf16>, vector<4x32xf32> -> vector<4x32xf32>
    %70 = arith.truncf %66 : vector<4x8xf32> to vector<4x8xbf16>
    %c0_41 = arith.constant 0 : index
    %c0_42 = arith.constant 0 : index
    %71 = vector.load %arg14[%c0_41, %c0_42] : memref<8x32xbf16, #tpu.memory_space<vmem>>, vector<8x32xbf16>
    %cst_43 = arith.constant dense<0.000000e+00> : vector<4x32xf32>
    %72 = tpu.matmul %70, %71, %cst_43 {dimension_numbers = #tpu.dot_dimension_numbers<[1], [0], [0], [1], [0, 0, 1, 1], [], []>} : vector<4x8xbf16>, vector<8x32xbf16>, vector<4x32xf32> -> vector<4x32xf32>
    %73 = arith.addf %69, %72 : vector<4x32xf32>
    %c0_44 = arith.constant 0 : index
    %c0_45 = arith.constant 0 : index
    %74 = vector.load %arg15[%c0_44, %c0_45] : memref<1x32xf32, #tpu.memory_space<vmem>>, vector<1x32xf32>
    %75 = vector.broadcast %74 : vector<1x32xf32> to vector<4x32xf32>
    %76 = arith.addf %73, %75 : vector<4x32xf32>
    %77 = math.tanh %76 : vector<4x32xf32>
    %78 = arith.truncf %77 : vector<4x32xf32> to vector<4x32xbf16>
    %c0_46 = arith.constant 0 : index
    %c0_47 = arith.constant 0 : index
    %79 = vector.load %arg16[%c0_46, %c0_47] : memref<32x2xbf16, #tpu.memory_space<vmem>>, vector<32x2xbf16>
    %cst_48 = arith.constant dense<0.000000e+00> : vector<4x2xf32>
    %80 = tpu.matmul %78, %79, %cst_48 {dimension_numbers = #tpu.dot_dimension_numbers<[1], [0], [0], [1], [0, 0, 1, 1], [], []>} : vector<4x32xbf16>, vector<32x2xbf16>, vector<4x2xf32> -> vector<4x2xf32>
    %c0_49 = arith.constant 0 : index
    %c0_50 = arith.constant 0 : index
    %81 = vector.load %arg17[%c0_49, %c0_50] : memref<1x2xf32, #tpu.memory_space<vmem>>, vector<1x2xf32>
    %82 = vector.broadcast %81 : vector<1x2xf32> to vector<4x2xf32>
    %83 = arith.addf %80, %82 : vector<4x2xf32>
    %c0_51 = arith.constant 0 : index
    %c0_52 = arith.constant 0 : index
    %84 = vector.load %arg18[%c0_51, %c0_52] : memref<4x2xf32, #tpu.memory_space<vmem>>, vector<4x2xf32>
    %85 = arith.subf %83, %84 : vector<4x2xf32>
    %86 = arith.mulf %85, %85 : vector<4x2xf32>
    %87 = vector.shape_cast %86 : vector<4x2xf32> to vector<1x4x2xf32>
    %cst_53 = arith.constant dense<0.000000e+00> : vector<1xf32>
    %88 = vector.multi_reduction <add>, %87, %cst_53 [1, 2] : vector<1x4x2xf32> to vector<1xf32>
    %89 = vector.shape_cast %88 : vector<1xf32> to vector<1x1x1xf32>
    %90 = vector.extract %89[0, 0, 0] : f32 from vector<1x1x1xf32>
    %cst_54 = arith.constant 8.000000e+00 : f32
    %91 = arith.divf %90, %cst_54 : f32
    %92 = arith.truncf %66 : vector<4x8xf32> to vector<4x8xbf16>
    %c0_55 = arith.constant 0 : index
    %c0_56 = arith.constant 0 : index
    %93 = vector.load %arg19[%c0_55, %c0_56] : memref<8x32xbf16, #tpu.memory_space<vmem>>, vector<8x32xbf16>
    %cst_57 = arith.constant dense<0.000000e+00> : vector<4x32xf32>
    %94 = tpu.matmul %92, %93, %cst_57 {dimension_numbers = #tpu.dot_dimension_numbers<[1], [0], [0], [1], [0, 0, 1, 1], [], []>} : vector<4x8xbf16>, vector<8x32xbf16>, vector<4x32xf32> -> vector<4x32xf32>
    %95 = arith.truncf %94 : vector<4x32xf32> to vector<4x32xbf16>
    %c0_58 = arith.constant 0 : index
    %c0_59 = arith.constant 0 : index
    %96 = vector.load %arg20[%c0_58, %c0_59] : memref<32x12xbf16, #tpu.memory_space<vmem>>, vector<32x12xbf16>
    %cst_60 = arith.constant dense<0.000000e+00> : vector<4x12xf32>
    %97 = tpu.matmul %95, %96, %cst_60 {dimension_numbers = #tpu.dot_dimension_numbers<[1], [0], [0], [1], [0, 0, 1, 1], [], []>} : vector<4x32xbf16>, vector<32x12xbf16>, vector<4x12xf32> -> vector<4x12xf32>
    %98 = tpu.iota {dimensions = array<i32: 0>} : vector<4x12xi32>
    %c0_61 = arith.constant 0 : index
    %c0_62 = arith.constant 0 : index
    %99 = vector.load %arg21[%c0_61, %c0_62] : memref<1x12xi32, #tpu.memory_space<vmem>>, vector<1x12xi32>
    %100 = vector.broadcast %99 : vector<1x12xi32> to vector<4x12xi32>
    %101 = arith.cmpi eq, %100, %98 : vector<4x12xi32>
    %cst_63 = arith.constant 0.000000e+00 : f32
    %102 = vector.broadcast %cst_63 : f32 to vector<4x12xf32>
    %103 = arith.select %101, %97, %102 : vector<4x12xi1>, vector<4x12xf32>
    %cst_64 = arith.constant dense<0.000000e+00> : vector<12xf32>
    %104 = vector.multi_reduction <add>, %103, %cst_64 [0] : vector<4x12xf32> to vector<12xf32>
    %105 = vector.shape_cast %104 : vector<12xf32> to vector<1x12xf32>
    %106 = tpu.iota {dimensions = array<i32: 0>} : vector<3x12xi32>
    %107 = tpu.iota {dimensions = array<i32: 1>} : vector<3x12xi32>
    %c0_65 = arith.constant 0 : index
    %c0_66 = arith.constant 0 : index
    %108 = vector.load %arg22[%c0_65, %c0_66] : memref<1x12xi32, #tpu.memory_space<vmem>>, vector<1x12xi32>
    %109 = vector.broadcast %108 : vector<1x12xi32> to vector<3x12xi32>
    %110 = arith.cmpi eq, %109, %106 : vector<3x12xi32>
    %cst_67 = arith.constant -1.000000e+30 : f32
    %111 = vector.shape_cast %105 : vector<1x12xf32> to vector<1x12xf32>
    %112 = vector.broadcast %111 : vector<1x12xf32> to vector<3x12xf32>
    %113 = vector.broadcast %cst_67 : f32 to vector<3x12xf32>
    %114 = arith.select %110, %112, %113 : vector<3x12xi1>, vector<3x12xf32>
    %cst_68 = arith.constant dense<0xFF800000> : vector<3xf32>
    %115 = vector.multi_reduction <maximumf>, %114, %cst_68 [1] : vector<3x12xf32> to vector<3xf32>
    %116 = vector.shape_cast %115 : vector<3xf32> to vector<3x1xf32>
    %117 = vector.broadcast %116 : vector<3x1xf32> to vector<3x12xf32>
    %118 = arith.subf %114, %117 : vector<3x12xf32>
    %119 = math.exp %118 : vector<3x12xf32>
    %cst_69 = arith.constant 0.000000e+00 : f32
    %120 = vector.broadcast %cst_69 : f32 to vector<3x12xf32>
    %121 = arith.select %110, %119, %120 : vector<3x12xi1>, vector<3x12xf32>
    %cst_70 = arith.constant dense<0.000000e+00> : vector<3xf32>
    %122 = vector.multi_reduction <add>, %121, %cst_70 [1] : vector<3x12xf32> to vector<3xf32>
    %123 = vector.shape_cast %122 : vector<3xf32> to vector<3x1xf32>
    %124 = math.log %123 : vector<3x1xf32>
    %125 = arith.addf %116, %124 : vector<3x1xf32>
    %c0_71 = arith.constant 0 : index
    %c0_72 = arith.constant 0 : index
    %126 = vector.load %arg23[%c0_71, %c0_72] : memref<3x1xi32, #tpu.memory_space<vmem>>, vector<3x1xi32>
    %127 = vector.broadcast %126 : vector<3x1xi32> to vector<3x12xi32>
    %128 = arith.cmpi eq, %107, %127 : vector<3x12xi32>
    %cst_73 = arith.constant 0.000000e+00 : f32
    %129 = vector.shape_cast %105 : vector<1x12xf32> to vector<1x12xf32>
    %130 = vector.broadcast %129 : vector<1x12xf32> to vector<3x12xf32>
    %131 = vector.broadcast %cst_73 : f32 to vector<3x12xf32>
    %132 = arith.select %128, %130, %131 : vector<3x12xi1>, vector<3x12xf32>
    %cst_74 = arith.constant dense<0.000000e+00> : vector<3xf32>
    %133 = vector.multi_reduction <add>, %132, %cst_74 [1] : vector<3x12xf32> to vector<3xf32>
    %134 = vector.shape_cast %133 : vector<3xf32> to vector<3x1xf32>
    %135 = arith.subf %125, %134 : vector<3x1xf32>
    %136 = vector.shape_cast %135 : vector<3x1xf32> to vector<1x3x1xf32>
    %cst_75 = arith.constant dense<0.000000e+00> : vector<1xf32>
    %137 = vector.multi_reduction <add>, %136, %cst_75 [1, 2] : vector<1x3x1xf32> to vector<1xf32>
    %138 = vector.shape_cast %137 : vector<1xf32> to vector<1x1x1xf32>
    %139 = vector.extract %138[0, 0, 0] : f32 from vector<1x1x1xf32>
    %cst_76 = arith.constant 2.500000e-01 : f32
    %140 = arith.mulf %139, %cst_76 : f32
    %141 = arith.cmpf oge, %134, %116 : vector<3x1xf32>
    %142 = arith.extui %141 : vector<3x1xi1> to vector<3x1xi32>
    %143 = arith.sitofp %142 : vector<3x1xi32> to vector<3x1xf32>
    %144 = vector.shape_cast %143 : vector<3x1xf32> to vector<1x3x1xf32>
    %cst_77 = arith.constant dense<0.000000e+00> : vector<1xf32>
    %145 = vector.multi_reduction <add>, %144, %cst_77 [1, 2] : vector<1x3x1xf32> to vector<1xf32>
    %146 = vector.shape_cast %145 : vector<1xf32> to vector<1x1x1xf32>
    %147 = vector.extract %146[0, 0, 0] : f32 from vector<1x1x1xf32>
    %cst_78 = arith.constant 3.000000e+00 : f32
    %148 = arith.divf %147, %cst_78 : f32
    %c0_79 = arith.constant 0 : index
    %c0_80 = arith.constant 0 : index
    %149 = vector.load %arg24[%c0_79, %c0_80] : memref<1x1xf32, #tpu.memory_space<vmem>>, vector<1x1xf32>
    %150 = vector.broadcast %60 : f32 to vector<1x1xf32>
    %151 = arith.mulf %149, %150 : vector<1x1xf32>
    %152 = vector.broadcast %140 : f32 to vector<1x1xf32>
    %153 = arith.addf %152, %151 : vector<1x1xf32>
    %154 = vector.broadcast %91 : f32 to vector<1x1xf32>
    %155 = arith.addf %153, %154 : vector<1x1xf32>
    %156 = tpu.iota {dimensions = array<i32: 1>} : vector<1x8xi32>
    %c0_i32 = arith.constant 0 : i32
    %157 = vector.broadcast %c0_i32 : i32 to vector<1x8xi32>
    %158 = arith.cmpi eq, %156, %157 : vector<1x8xi32>
    %cst_81 = arith.constant 0.000000e+00 : f32
    %159 = vector.shape_cast %155 : vector<1x1xf32> to vector<1x1xf32>
    %160 = vector.broadcast %159 : vector<1x1xf32> to vector<1x8xf32>
    %161 = vector.broadcast %cst_81 : f32 to vector<1x8xf32>
    %162 = arith.select %158, %160, %161 : vector<1x8xi1>, vector<1x8xf32>
    %c1_i32 = arith.constant 1 : i32
    %163 = vector.broadcast %c1_i32 : i32 to vector<1x8xi32>
    %164 = arith.cmpi eq, %156, %163 : vector<1x8xi32>
    %cst_82 = arith.constant 0.000000e+00 : f32
    %165 = vector.broadcast %60 : f32 to vector<1x8xf32>
    %166 = vector.broadcast %cst_82 : f32 to vector<1x8xf32>
    %167 = arith.select %164, %165, %166 : vector<1x8xi1>, vector<1x8xf32>
    %168 = arith.addf %162, %167 : vector<1x8xf32>
    %c2_i32 = arith.constant 2 : i32
    %169 = vector.broadcast %c2_i32 : i32 to vector<1x8xi32>
    %170 = arith.cmpi eq, %156, %169 : vector<1x8xi32>
    %cst_83 = arith.constant 0.000000e+00 : f32
    %171 = vector.broadcast %91 : f32 to vector<1x8xf32>
    %172 = vector.broadcast %cst_83 : f32 to vector<1x8xf32>
    %173 = arith.select %170, %171, %172 : vector<1x8xi1>, vector<1x8xf32>
    %174 = arith.addf %168, %173 : vector<1x8xf32>
    %c3_i32 = arith.constant 3 : i32
    %175 = vector.broadcast %c3_i32 : i32 to vector<1x8xi32>
    %176 = arith.cmpi eq, %156, %175 : vector<1x8xi32>
    %cst_84 = arith.constant 0.000000e+00 : f32
    %177 = vector.broadcast %140 : f32 to vector<1x8xf32>
    %178 = vector.broadcast %cst_84 : f32 to vector<1x8xf32>
    %179 = arith.select %176, %177, %178 : vector<1x8xi1>, vector<1x8xf32>
    %180 = arith.addf %174, %179 : vector<1x8xf32>
    %c4_i32 = arith.constant 4 : i32
    %181 = vector.broadcast %c4_i32 : i32 to vector<1x8xi32>
    %182 = arith.cmpi eq, %156, %181 : vector<1x8xi32>
    %cst_85 = arith.constant 0.000000e+00 : f32
    %183 = vector.broadcast %148 : f32 to vector<1x8xf32>
    %184 = vector.broadcast %cst_85 : f32 to vector<1x8xf32>
    %185 = arith.select %182, %183, %184 : vector<1x8xi1>, vector<1x8xf32>
    %186 = arith.addf %180, %185 : vector<1x8xf32>
    %c0_86 = arith.constant 0 : index
    %c0_87 = arith.constant 0 : index
    %187 = vector.load %arg25[%c0_86, %c0_87] : memref<1x8xf32, #tpu.memory_space<vmem>>, vector<1x8xf32>
    tpu.vector_store %arg25[%c0_86, %c0_87], %186 {strides = array<i32>} : memref<1x8xf32, #tpu.memory_space<vmem>>, vector<1x8xf32>,
    return
  }
  func.func @transform_0(%arg0: i32) -> (i32, i32) {
    %c0_i32 = arith.constant 0 : i32
    %c0_i32_0 = arith.constant 0 : i32
    %c0_i32_1 = arith.constant 0 : i32
    return %c0_i32, %c0_i32_0 : i32, i32
  }
  func.func @transform_1(%arg0: i32) -> (i32, i32) {
    %c0_i32 = arith.constant 0 : i32
    %c0_i32_0 = arith.constant 0 : i32
    %c0_i32_1 = arith.constant 0 : i32
    return %c0_i32, %c0_i32_0 : i32, i32
  }
  func.func @transform_2(%arg0: i32) -> (i32, i32) {
    %c0_i32 = arith.constant 0 : i32
    %c0_i32_0 = arith.constant 0 : i32
    %c0_i32_1 = arith.constant 0 : i32
    return %c0_i32, %c0_i32_0 : i32, i32
  }
  func.func @transform_3(%arg0: i32) -> (i32, i32) {
    %c0_i32 = arith.constant 0 : i32
    %c0_i32_0 = arith.constant 0 : i32
    %c0_i32_1 = arith.constant 0 : i32
    return %c0_i32, %c0_i32_0 : i32, i32
  }
  func.func @transform_4(%arg0: i32) -> (i32, i32) {
    %c0_i32 = arith.constant 0 : i32
    %c0_i32_0 = arith.constant 0 : i32
    %c0_i32_1 = arith.constant 0 : i32
    return %c0_i32, %c0_i32_0 : i32, i32
  }
  func.func @transform_5(%arg0: i32) -> (i32, i32) {
    %c0_i32 = arith.constant 0 : i32
    %c0_i32_0 = arith.constant 0 : i32
    %c0_i32_1 = arith.constant 0 : i32
    return %c0_i32, %c0_i32_0 : i32, i32
  }
  func.func @transform_6(%arg0: i32) -> (i32, i32) {
    %c0_i32 = arith.constant 0 : i32
    %c0_i32_0 = arith.constant 0 : i32
    %c0_i32_1 = arith.constant 0 : i32
    return %c0_i32, %c0_i32_0 : i32, i32
  }
  func.func @transform_7(%arg0: i32) -> (i32, i32) {
    %c0_i32 = arith.constant 0 : i32
    %c0_i32_0 = arith.constant 0 : i32
    %c0_i32_1 = arith.constant 0 : i32
    return %c0_i32, %c0_i32_0 : i32, i32
  }
  func.func @transform_8(%arg0: i32) -> (i32, i32) {
    %c0_i32 = arith.constant 0 : i32
    %c0_i32_0 = arith.constant 0 : i32
    %c0_i32_1 = arith.constant 0 : i32
    return %c0_i32, %c0_i32_0 : i32, i32
  }
  func.func @transform_9(%arg0: i32) -> (i32, i32) {
    %c0_i32 = arith.constant 0 : i32
    %c0_i32_0 = arith.constant 0 : i32
    %c0_i32_1 = arith.constant 0 : i32
    return %c0_i32, %c0_i32_0 : i32, i32
  }
  func.func @transform_10(%arg0: i32) -> (i32, i32) {
    %c0_i32 = arith.constant 0 : i32
    %c0_i32_0 = arith.constant 0 : i32
    %c0_i32_1 = arith.constant 0 : i32
    return %c0_i32, %c0_i32_0 : i32, i32
  }
  func.func @transform_11(%arg0: i32) -> (i32, i32) {
    %c0_i32 = arith.constant 0 : i32
    %c0_i32_0 = arith.constant 0 : i32
    %c0_i32_1 = arith.constant 0 : i32
    return %c0_i32, %c0_i32_0 : i32, i32
  }
  func.func @transform_12(%arg0: i32) -> (i32, i32) {
    %c0_i32 = arith.constant 0 : i32
    %c0_i32_0 = arith.constant 0 : i32
    %c0_i32_1 = arith.constant 0 : i32
    return %c0_i32, %c0_i32_0 : i32, i32
  }
  func.func @transform_13(%arg0: i32) -> (i32, i32) {
    %c0_i32 = arith.constant 0 : i32
    %c0_i32_0 = arith.constant 0 : i32
    %c0_i32_1 = arith.constant 0 : i32
    return %c0_i32, %c0_i32_0 : i32, i32
  }
  func.func @transform_14(%arg0: i32) -> (i32, i32) {
    %c0_i32 = arith.constant 0 : i32
    %c0_i32_0 = arith.constant 0 : i32
    %c0_i32_1 = arith.constant 0 : i32
    return %c0_i32, %c0_i32_0 : i32, i32
  }
  func.func @transform_15(%arg0: i32) -> (i32, i32) {
    %c0_i32 = arith.constant 0 : i32
    %c0_i32_0 = arith.constant 0 : i32
    %c0_i32_1 = arith.constant 0 : i32
    return %c0_i32, %c0_i32_0 : i32, i32
  }
  func.func @transform_16(%arg0: i32) -> (i32, i32) {
    %c0_i32 = arith.constant 0 : i32
    %c0_i32_0 = arith.constant 0 : i32
    %c0_i32_1 = arith.constant 0 : i32
    return %c0_i32, %c0_i32_0 : i32, i32
  }
  func.func @transform_17(%arg0: i32) -> (i32, i32) {
    %c0_i32 = arith.constant 0 : i32
    %c0_i32_0 = arith.constant 0 : i32
    %c0_i32_1 = arith.constant 0 : i32
    return %c0_i32, %c0_i32_0 : i32, i32
  }
  func.func @transform_18(%arg0: i32) -> (i32, i32) {
    %c0_i32 = arith.constant 0 : i32
    %c0_i32_0 = arith.constant 0 : i32
    %c0_i32_1 = arith.constant 0 : i32
    return %c0_i32, %c0_i32_0 : i32, i32
  }
  func.func @transform_19(%arg0: i32) -> (i32, i32) {
    %c0_i32 = arith.constant 0 : i32
    %c0_i32_0 = arith.constant 0 : i32
    %c0_i32_1 = arith.constant 0 : i32
    return %c0_i32, %c0_i32_0 : i32, i32
  }
  func.func @transform_20(%arg0: i32) -> (i32, i32) {
    %c0_i32 = arith.constant 0 : i32
    %c0_i32_0 = arith.constant 0 : i32
    %c0_i32_1 = arith.constant 0 : i32
    return %c0_i32, %c0_i32_0 : i32, i32
  }
  func.func @transform_21(%arg0: i32) -> (i32, i32) {
    %c0_i32 = arith.constant 0 : i32
    %c0_i32_0 = arith.constant 0 : i32
    %c0_i32_1 = arith.constant 0 : i32
    return %c0_i32, %c0_i32_0 : i32, i32
  }
  func.func @transform_22(%arg0: i32) -> (i32, i32) {
    %c0_i32 = arith.constant 0 : i32
    %c0_i32_0 = arith.constant 0 : i32
    %c0_i32_1 = arith.constant 0 : i32
    return %c0_i32, %c0_i32_0 : i32, i32
  }
  func.func @transform_23(%arg0: i32) -> (i32, i32) {
    %c0_i32 = arith.constant 0 : i32
    %c0_i32_0 = arith.constant 0 : i32
    %c0_i32_1 = arith.constant 0 : i32
    return %c0_i32, %c0_i32_0 : i32, i32
  }
  func.func @transform_24(%arg0: i32) -> (i32, i32) {
    %c0_i32 = arith.constant 0 : i32
    %c0_i32_0 = arith.constant 0 : i32
    %c0_i32_1 = arith.constant 0 : i32
    return %c0_i32, %c0_i32_0 : i32, i32
  }
}

</mosaic_0001>

<llo_original>
// kernel: _fused_head.1
$region0: #{_fused_head.1}
  #allocation0 [shape = 'u32[]', space=smem, size = 0x4, offset = 0x4, fixed_abs, tag = 'smem constant byte address 0x4 - core index']
  #allocation1 [shape = 'u32[144,128]{1,0:T(1,128)}', space=vmem, size = 0x12000, scoped, tag = 'internal scratch']
  #allocation2 [shape = 'f32[1,1]{1,0:T(1,128)S(1)}', space=vmem, size = 0x200, scoped, tag = 'scoped memory for _fused_head.1']
  %s0 = inlined_call_operand.vmem [shape: f32[4,32], index: 0, kind: input, shape index: {}]
  %s1 = inlined_call_operand.vmem [shape: f32[4,32], index: 1, kind: input, shape index: {}]
  %s2 = inlined_call_operand.vmem [shape: bf16[32,8], index: 2, kind: input, shape index: {}]
  %s3 = inlined_call_operand.vmem [shape: f32[1,8], index: 3, kind: input, shape index: {}]
  %s4 = inlined_call_operand.vmem [shape: bf16[32,8], index: 4, kind: input, shape index: {}]
  %s5 = inlined_call_operand.vmem [shape: f32[1,8], index: 5, kind: input, shape index: {}]
  %s6 = inlined_call_operand.vmem [shape: bf16[32,8], index: 6, kind: input, shape index: {}]
  %s7 = inlined_call_operand.vmem [shape: f32[1,8], index: 7, kind: input, shape index: {}]
  %s8 = inlined_call_operand.vmem [shape: bf16[32,8], index: 8, kind: input, shape index: {}]
  %s9 = inlined_call_operand.vmem [shape: f32[1,8], index: 9, kind: input, shape index: {}]
  %s10 = inlined_call_operand.vmem [shape: f32[4,8], index: 10, kind: input, shape index: {}]
  %s11 = inlined_call_operand.vmem [shape: f32[4,8], index: 11, kind: input, shape index: {}]
  %s12 = inlined_call_operand.vmem [shape: bf16[8,32], index: 12, kind: input, shape index: {}]
  %s13 = inlined_call_operand.vmem [shape: bf16[8,32], index: 13, kind: input, shape index: {}]
  %s14 = inlined_call_operand.vmem [shape: f32[1,32], index: 14, kind: input, shape index: {}]
  %s15 = inlined_call_operand.vmem [shape: bf16[32,2], index: 15, kind: input, shape index: {}]
  %s16 = inlined_call_operand.vmem [shape: f32[1,2], index: 16, kind: input, shape index: {}]
  %s17 = inlined_call_operand.vmem [shape: f32[4,2], index: 17, kind: input, shape index: {}]
  %s18 = inlined_call_operand.vmem [shape: bf16[8,32], index: 18, kind: input, shape index: {}]
  %s19 = inlined_call_operand.vmem [shape: bf16[32,12], index: 19, kind: input, shape index: {}]
  %s20 = inlined_call_operand.vmem [shape: s32[1,12], index: 20, kind: input, shape index: {}]
  %s21 = inlined_call_operand.vmem [shape: s32[1,12], index: 21, kind: input, shape index: {}]
  %s22 = inlined_call_operand.vmem [shape: s32[3,1], index: 22, kind: input, shape index: {}]
  %s23 = inlined_call_operand.<no memory space> [shape: f32[1,1], index: 23, kind: input, shape index: {}]
  %s24 = inlined_call_operand.hbm [shape: f32[1,8], index: 24, kind: output, shape index: {}]
  %s25 = sld [smem:[#allocation0]]
  $region106: #{_fused_head.1} parent=0
    _
  %s27 = ssub.s32 1, %s25
  %s28 = scalar_select 0, %s27, %s25
  %v29 = vstv %s23
  %30 = vst [vmem:[#allocation2] sm:$0x1] %v29
  $region1: #{_fused_head.1} parent=0
    #allocation3 [shape = 'u8[512]{0}', space=vmem, size = 0x400, scoped, tag = 'output window, operand 0, single buffered']
    #allocation4 [shape = 's32[1]{0}', space=sflag, size = 0x4, scoped, tag = 'scoped memory for _fused_head.1']
    %31 = vsyncpa [#allocation4], 0
    // Predicated region
    $region2: #{_fused_head.1} parent=1 // pred_check
      _
    $region3: #{_fused_head.1} parent=1 // pred_check_branch
      %33 = sbr.rel (0) target = $region5
    $region4: #{_fused_head.1} parent=1 // pred_region
      _
    $region5: #{_fused_head.1} parent=1 // pred_fallthru
      _
    // Predicated region
    $region6: #{_fused_head.1} parent=1 // pred_check
      _
    $region7: #{_fused_head.1} parent=1 // pred_check_branch
      %35 = sbr.rel (0) target = $region9
    $region8: #{_fused_head.1} parent=1 // pred_region
      _
    $region9: #{_fused_head.1} parent=1 // pred_fallthru
      _
    // Predicated region
    $region10: #{_fused_head.1} parent=1 // pred_check
      _
    $region11: #{_fused_head.1} parent=1 // pred_check_branch
      %37 = sbr.rel (0) target = $region13
    $region12: #{_fused_head.1} parent=1 // pred_region
      _
    $region13: #{_fused_head.1} parent=1 // pred_fallthru
      _
    // Predicated region
    $region14: #{_fused_head.1} parent=1 // pred_check
      _
    $region15: #{_fused_head.1} parent=1 // pred_check_branch
      %39 = sbr.rel (0) target = $region17
    $region16: #{_fused_head.1} parent=1 // pred_region
      _
    $region17: #{_fused_head.1} parent=1 // pred_fallthru
      _
    // Predicated region
    $region18: #{_fused_head.1} parent=1 // pred_check
      _
    $region19: #{_fused_head.1} parent=1 // pred_check_branch
      %41 = sbr.rel (0) target = $region21
    $region20: #{_fused_head.1} parent=1 // pred_region
      _
    $region21: #{_fused_head.1} parent=1 // pred_fallthru
      _
    // Predicated region
    $region22: #{_fused_head.1} parent=1 // pred_check
      _
    $region23: #{_fused_head.1} parent=1 // pred_check_branch
      %43 = sbr.rel (0) target = $region25
    $region24: #{_fused_head.1} parent=1 // pred_region
      _
    $region25: #{_fused_head.1} parent=1 // pred_fallthru
      _
    // Predicated region
    $region26: #{_fused_head.1} parent=1 // pred_check
      _
    $region27: #{_fused_head.1} parent=1 // pred_check_branch
      %45 = sbr.rel (0) target = $region29
    $region28: #{_fused_head.1} parent=1 // pred_region
      _
    $region29: #{_fused_head.1} parent=1 // pred_fallthru
      _
    // Predicated region
    $region30: #{_fused_head.1} parent=1 // pred_check
      _
    $region31: #{_fused_head.1} parent=1 // pred_check_branch
      %47 = sbr.rel (0) target = $region33
    $region32: #{_fused_head.1} parent=1 // pred_region
      _
    $region33: #{_fused_head.1} parent=1 // pred_fallthru
      _
    // Predicated region
    $region34: #{_fused_head.1} parent=1 // pred_check
      _
    $region35: #{_fused_head.1} parent=1 // pred_check_branch
      %49 = sbr.rel (0) target = $region37
    $region36: #{_fused_head.1} parent=1 // pred_region
      _
    $region37: #{_fused_head.1} parent=1 // pred_fallthru
      _
    // Predicated region
    $region38: #{_fused_head.1} parent=1 // pred_check
      _
    $region39: #{_fused_head.1} parent=1 // pred_check_branch
      %51 = sbr.rel (0) target = $region41
    $region40: #{_fused_head.1} parent=1 // pred_region
      _
    $region41: #{_fused_head.1} parent=1 // pred_fallthru
      _
    // Predicated region
    $region42: #{_fused_head.1} parent=1 // pred_check
      _
    $region43: #{_fused_head.1} parent=1 // pred_check_branch
      %53 = sbr.rel (0) target = $region45
    $region44: #{_fused_head.1} parent=1 // pred_region
      _
    $region45: #{_fused_head.1} parent=1 // pred_fallthru
      _
    // Predicated region
    $region46: #{_fused_head.1} parent=1 // pred_check
      _
    $region47: #{_fused_head.1} parent=1 // pred_check_branch
      %55 = sbr.rel (0) target = $region49
    $region48: #{_fused_head.1} parent=1 // pred_region
      _
    $region49: #{_fused_head.1} parent=1 // pred_fallthru
      _
    // Predicated region
    $region50: #{_fused_head.1} parent=1 // pred_check
      _
    $region51: #{_fused_head.1} parent=1 // pred_check_branch
      %57 = sbr.rel (0) target = $region53
    $region52: #{_fused_head.1} parent=1 // pred_region
      _
    $region53: #{_fused_head.1} parent=1 // pred_fallthru
      _
    // Predicated region
    $region54: #{_fused_head.1} parent=1 // pred_check
      _
    $region55: #{_fused_head.1} parent=1 // pred_check_branch
      %59 = sbr.rel (0) target = $region57
    $region56: #{_fused_head.1} parent=1 // pred_region
      _
    $region57: #{_fused_head.1} parent=1 // pred_fallthru
      _
    // Predicated region
    $region58: #{_fused_head.1} parent=1 // pred_check
      _
    $region59: #{_fused_head.1} parent=1 // pred_check_branch
      %61 = sbr.rel (0) target = $region61
    $region60: #{_fused_head.1} parent=1 // pred_region
      _
    $region61: #{_fused_head.1} parent=1 // pred_fallthru
      _
    // Predicated region
    $region62: #{_fused_head.1} parent=1 // pred_check
      _
    $region63: #{_fused_head.1} parent=1 // pred_check_branch
      %63 = sbr.rel (0) target = $region65
    $region64: #{_fused_head.1} parent=1 // pred_region
      _
    $region65: #{_fused_head.1} parent=1 // pred_fallthru
      _
    // Predicated region
    $region66: #{_fused_head.1} parent=1 // pred_check
      _
    $region67: #{_fused_head.1} parent=1 // pred_check_branch
      %65 = sbr.rel (0) target = $region69
    $region68: #{_fused_head.1} parent=1 // pred_region
      _
    $region69: #{_fused_head.1} parent=1 // pred_fallthru
      _
    // Predicated region
    $region70: #{_fused_head.1} parent=1 // pred_check
      _
    $region71: #{_fused_head.1} parent=1 // pred_check_branch
      %67 = sbr.rel (0) target = $region73
    $region72: #{_fused_head.1} parent=1 // pred_region
      _
    $region73: #{_fused_head.1} parent=1 // pred_fallthru
      _
    // Predicated region
    $region74: #{_fused_head.1} parent=1 // pred_check
      _
    $region75: #{_fused_head.1} parent=1 // pred_check_branch
      %69 = sbr.rel (0) target = $region77
    $region76: #{_fused_head.1} parent=1 // pred_region
      _
    $region77: #{_fused_head.1} parent=1 // pred_fallthru
      _
    // Predicated region
    $region78: #{_fused_head.1} parent=1 // pred_check
      _
    $region79: #{_fused_head.1} parent=1 // pred_check_branch
      %71 = sbr.rel (0) target = $region81
    $region80: #{_fused_head.1} parent=1 // pred_region
      _
    $region81: #{_fused_head.1} parent=1 // pred_fallthru
      _
    // Predicated region
    $region82: #{_fused_head.1} parent=1 // pred_check
      _
    $region83: #{_fused_head.1} parent=1 // pred_check_branch
      %73 = sbr.rel (0) target = $region85
    $region84: #{_fused_head.1} parent=1 // pred_region
      _
    $region85: #{_fused_head.1} parent=1 // pred_fallthru
      _
    // Predicated region
    $region86: #{_fused_head.1} parent=1 // pred_check
      _
    $region87: #{_fused_head.1} parent=1 // pred_check_branch
      %75 = sbr.rel (0) target = $region89
    $region88: #{_fused_head.1} parent=1 // pred_region
      _
    $region89: #{_fused_head.1} parent=1 // pred_fallthru
      _
    // Predicated region
    $region90: #{_fused_head.1} parent=1 // pred_check
      _
    $region91: #{_fused_head.1} parent=1 // pred_check_branch
      %77 = sbr.rel (0) target = $region93
    $region92: #{_fused_head.1} parent=1 // pred_region
      _
    $region93: #{_fused_head.1} parent=1 // pred_fallthru
      _
    // Predicated region
    $region94: #{_fused_head.1} parent=1 // pred_check
      _
    $region95: #{_fused_head.1} parent=1 // pred_check_branch
      %79 = sbr.rel (0) target = $region97
    $region96: #{_fused_head.1} parent=1 // pred_region
      _
    $region97: #{_fused_head.1} parent=1 // pred_fallthru
      _
    %v81 = vld [vmem:[%s0] sm:$0xf]
    %v82 = vpack.c.bf16 %v81, %v81
    %v83 = vld [vmem:[%s1] sm:$0xf]
    %v84 = vpack.c.bf16 %v83, %v83
    %v85 = vld [vmem:[%s2] sm:$0xf]
    %v86 = vld [vmem:[%s2 + $0x4] sm:$0xf]
    %v87 = vld [vmem:[%s2 + $0x8] sm:$0xf]
    %v88 = vld [vmem:[%s2 + $0xc] sm:$0xf]
    %v89 = vld [vmem:[%s3] sm:$0x1]
    %v91 = vlaneseq
    %v92 = vshrl.u32 %v91, 7
    %v93 = vsub.s32 0, %v92
    %v94 = vrot.slane %v89, %v93
    %v100 = vunpack.c.l.b16 %v85
    %v101 = vunpack.c.l.b16 %v86
    %v102 = vunpack.c.l.b16 %v87
    %v103 = vunpack.c.l.b16 %v88
    %v104 = vpack.c.b16 %v101, %v100
    %v105 = vpack.c.b16 %v103, %v102
    %vm108 = vcmask 261120
    %v110 = vsel %vm108, %v82, 0
    %112 = vmatprep.subr.bf16.mxu0 0
    %113 = vmatpush1.bf16.msra.mxu0 %v104
    %114 = vmatprep.subr.bf16.mxu0 0
    %115 = vmatpush1.bf16.msra.mxu0 %v105
    %116 = vmatprep.subr.bf16.mxu0 0
    %117 = vmatpush1.bf16.msra.mxu0 0
    %118 = vmatprep.subr.bf16.mxu0 0
    %119 = vmatpush1.bf16.msra.mxu0 0
    %120 = vmatprep.subr.bf16.mxu0 0
    %121 = vmatpush1.bf16.msra.mxu0 0
    %122 = vmatprep.subr.bf16.mxu0 0
    %123 = vmatpush1.bf16.msra.mxu0 0
    %124 = vmatprep.subr.bf16.mxu0 0
    %125 = vmatpush1.bf16.msra.mxu0 0
    %126 = vmatprep.subr.bf16.mxu0 0
    %127 = vmatpush1.bf16.msra.mxu0 0
    %128 = vmatprep.subr.bf16.mxu0 0
    %129 = vmatpush1.bf16.msra.mxu0 0
    %130 = vmatprep.subr.bf16.mxu0 0
    %131 = vmatpush1.bf16.msra.mxu0 0
    %132 = vmatprep.subr.bf16.mxu0 0
    %133 = vmatpush1.bf16.msra.mxu0 0
    %134 = vmatprep.subr.bf16.mxu0 0
    %135 = vmatpush1.bf16.msra.mxu0 0
    %136 = vmatprep.subr.bf16.mxu0 0
    %137 = vmatpush1.bf16.msra.mxu0 0
    %138 = vmatprep.subr.bf16.mxu0 0
    %139 = vmatpush1.bf16.msra.mxu0 0
    %140 = vmatprep.subr.bf16.mxu0 0
    %141 = vmatpush1.bf16.msra.mxu0 0
    %142 = vmatprep.subr.bf16.mxu0 0
    %143 = vmatpush1.bf16.msra.mxu0 0
    %144 = vmatprep.mubr.bf16.mxu0 0
    %145 = vmatmul.mubr.bf16.gmra.mrb[0].mxu0 %v110
    %v146 = vpop.f32.mrb[0].mxu0
    %v147 = vadd.f32 %v94, %v146
    %v148 = vpop.f32.mrb[0].mxu0
    %v149 = vpop.f32.mrb[0].mxu0
    %v150 = vpop.f32.mrb[0].mxu0
    %151 = vdwg.mxu0
    %v152 = vld [vmem:[%s4] sm:$0xf]
    %v153 = vld [vmem:[%s4 + $0x4] sm:$0xf]
    %v154 = vld [vmem:[%s4 + $0x8] sm:$0xf]
    %v155 = vld [vmem:[%s4 + $0xc] sm:$0xf]
    %v156 = vld [vmem:[%s5] sm:$0x1]
    %v158 = vlaneseq
    %v159 = vshrl.u32 %v158, 7
    %v160 = vsub.s32 0, %v159
    %v161 = vrot.slane %v156, %v160
    %v167 = vunpack.c.l.b16 %v152
    %v168 = vunpack.c.l.b16 %v153
    %v169 = vunpack.c.l.b16 %v154
    %v170 = vunpack.c.l.b16 %v155
    %v171 = vpack.c.b16 %v168, %v167
    %v172 = vpack.c.b16 %v170, %v169
    %175 = vmatprep.subr.bf16.mxu0 0
    %176 = vmatpush1.bf16.msra.mxu0 %v171
    %177 = vmatprep.subr.bf16.mxu0 0
    %178 = vmatpush1.bf16.msra.mxu0 %v172
    %179 = vmatprep.subr.bf16.mxu0 0
    %180 = vmatpush1.bf16.msra.mxu0 0
    %181 = vmatprep.subr.bf16.mxu0 0
    %182 = vmatpush1.bf16.msra.mxu0 0
    %183 = vmatprep.subr.bf16.mxu0 0
    %184 = vmatpush1.bf16.msra.mxu0 0
    %185 = vmatprep.subr.bf16.mxu0 0
    %186 = vmatpush1.bf16.msra.mxu0 0
    %187 = vmatprep.subr.bf16.mxu0 0
    %188 = vmatpush1.bf16.msra.mxu0 0
    %189 = vmatprep.subr.bf16.mxu0 0
    %190 = vmatpush1.bf16.msra.mxu0 0
    %191 = vmatprep.subr.bf16.mxu0 0
    %192 = vmatpush1.bf16.msra.mxu0 0
    %193 = vmatprep.subr.bf16.mxu0 0
    %194 = vmatpush1.bf16.msra.mxu0 0
    %195 = vmatprep.subr.bf16.mxu0 0
    %196 = vmatpush1.bf16.msra.mxu0 0
    %197 = vmatprep.subr.bf16.mxu0 0
    %198 = vmatpush1.bf16.msra.mxu0 0
    %199 = vmatprep.subr.bf16.mxu0 0
    %200 = vmatpush1.bf16.msra.mxu0 0
    %201 = vmatprep.subr.bf16.mxu0 0
    %202 = vmatpush1.bf16.msra.mxu0 0
    %203 = vmatprep.subr.bf16.mxu0 0
    %204 = vmatpush1.bf16.msra.mxu0 0
    %205 = vmatprep.subr.bf16.mxu0 0
    %206 = vmatpush1.bf16.msra.mxu0 0
    %207 = vmatprep.mubr.bf16.mxu0 0
    %208 = vmatmul.mubr.bf16.gmra.mrb[0].mxu0 %v110
    %v209 = vpop.f32.mrb[0].mxu0
    %v210 = vadd.f32 %v161, %v209
    %v211 = vpop.f32.mrb[0].mxu0
    %v212 = vpop.f32.mrb[0].mxu0
    %v213 = vpop.f32.mrb[0].mxu0
    %214 = vdwg.mxu0
    %v215 = vand.u32 2147483647, %v210
    %v216 = vsub.f32 0.0, %v215
    %v217 = vld [vmem:[%s6] sm:$0xf]
    %v218 = vld [vmem:[%s6 + $0x4] sm:$0xf]
    %v219 = vld [vmem:[%s6 + $0x8] sm:$0xf]
    %v220 = vld [vmem:[%s6 + $0xc] sm:$0xf]
    %v221 = vld [vmem:[%s7] sm:$0x1]
    %v223 = vlaneseq
    %v224 = vshrl.u32 %v223, 7
    %v225 = vsub.s32 0, %v224
    %v226 = vrot.slane %v221, %v225
    %v232 = vunpack.c.l.b16 %v217
    %v233 = vunpack.c.l.b16 %v218
    %v234 = vunpack.c.l.b16 %v219
    %v235 = vunpack.c.l.b16 %v220
    %v236 = vpack.c.b16 %v233, %v232
    %v237 = vpack.c.b16 %v235, %v234
    %v241 = vsel %vm108, %v84, 0
    %243 = vmatprep.subr.bf16.mxu0 0
    %244 = vmatpush1.bf16.msra.mxu0 %v236
    %245 = vmatprep.subr.bf16.mxu0 0
    %246 = vmatpush1.bf16.msra.mxu0 %v237
    %247 = vmatprep.subr.bf16.mxu0 0
    %248 = vmatpush1.bf16.msra.mxu0 0
    %249 = vmatprep.subr.bf16.mxu0 0
    %250 = vmatpush1.bf16.msra.mxu0 0
    %251 = vmatprep.subr.bf16.mxu0 0
    %252 = vmatpush1.bf16.msra.mxu0 0
    %253 = vmatprep.subr.bf16.mxu0 0
    %254 = vmatpush1.bf16.msra.mxu0 0
    %255 = vmatprep.subr.bf16.mxu0 0
    %256 = vmatpush1.bf16.msra.mxu0 0
    %257 = vmatprep.subr.bf16.mxu0 0
    %258 = vmatpush1.bf16.msra.mxu0 0
    %259 = vmatprep.subr.bf16.mxu0 0
    %260 = vmatpush1.bf16.msra.mxu0 0
    %261 = vmatprep.subr.bf16.mxu0 0
    %262 = vmatpush1.bf16.msra.mxu0 0
    %263 = vmatprep.subr.bf16.mxu0 0
    %264 = vmatpush1.bf16.msra.mxu0 0
    %265 = vmatprep.subr.bf16.mxu0 0
    %266 = vmatpush1.bf16.msra.mxu0 0
    %267 = vmatprep.subr.bf16.mxu0 0
    %268 = vmatpush1.bf16.msra.mxu0 0
    %269 = vmatprep.subr.bf16.mxu0 0
    %270 = vmatpush1.bf16.msra.mxu0 0
    %271 = vmatprep.subr.bf16.mxu0 0
    %272 = vmatpush1.bf16.msra.mxu0 0
    %273 = vmatprep.subr.bf16.mxu0 0
    %274 = vmatpush1.bf16.msra.mxu0 0
    %275 = vmatprep.mubr.bf16.mxu0 0
    %276 = vmatmul.mubr.bf16.gmra.mrb[0].mxu0 %v241
    %v277 = vpop.f32.mrb[0].mxu0
    %v278 = vadd.f32 %v226, %v277
    %v279 = vpop.f32.mrb[0].mxu0
    %v280 = vpop.f32.mrb[0].mxu0
    %v281 = vpop.f32.mrb[0].mxu0
    %282 = vdwg.mxu0
    %v283 = vld [vmem:[%s8] sm:$0xf]
    %v284 = vld [vmem:[%s8 + $0x4] sm:$0xf]
    %v285 = vld [vmem:[%s8 + $0x8] sm:$0xf]
    %v286 = vld [vmem:[%s8 + $0xc] sm:$0xf]
    %v287 = vld [vmem:[%s9] sm:$0x1]
    %v289 = vlaneseq
    %v290 = vshrl.u32 %v289, 7
    %v291 = vsub.s32 0, %v290
    %v292 = vrot.slane %v287, %v291
    %v298 = vunpack.c.l.b16 %v283
    %v299 = vunpack.c.l.b16 %v284
    %v300 = vunpack.c.l.b16 %v285
    %v301 = vunpack.c.l.b16 %v286
    %v302 = vpack.c.b16 %v299, %v298
    %v303 = vpack.c.b16 %v301, %v300
    %306 = vmatprep.subr.bf16.mxu0 0
    %307 = vmatpush1.bf16.msra.mxu0 %v302
    %308 = vmatprep.subr.bf16.mxu0 0
    %309 = vmatpush1.bf16.msra.mxu0 %v303
    %310 = vmatprep.subr.bf16.mxu0 0
    %311 = vmatpush1.bf16.msra.mxu0 0
    %312 = vmatprep.subr.bf16.mxu0 0
    %313 = vmatpush1.bf16.msra.mxu0 0
    %314 = vmatprep.subr.bf16.mxu0 0
    %315 = vmatpush1.bf16.msra.mxu0 0
    %316 = vmatprep.subr.bf16.mxu0 0
    %317 = vmatpush1.bf16.msra.mxu0 0
    %318 = vmatprep.subr.bf16.mxu0 0
    %319 = vmatpush1.bf16.msra.mxu0 0
    %320 = vmatprep.subr.bf16.mxu0 0
    %321 = vmatpush1.bf16.msra.mxu0 0
    %322 = vmatprep.subr.bf16.mxu0 0
    %323 = vmatpush1.bf16.msra.mxu0 0
    %324 = vmatprep.subr.bf16.mxu0 0
    %325 = vmatpush1.bf16.msra.mxu0 0
    %326 = vmatprep.subr.bf16.mxu0 0
    %327 = vmatpush1.bf16.msra.mxu0 0
    %328 = vmatprep.subr.bf16.mxu0 0
    %329 = vmatpush1.bf16.msra.mxu0 0
    %330 = vmatprep.subr.bf16.mxu0 0
    %331 = vmatpush1.bf16.msra.mxu0 0
    %332 = vmatprep.subr.bf16.mxu0 0
    %333 = vmatpush1.bf16.msra.mxu0 0
    %334 = vmatprep.subr.bf16.mxu0 0
    %335 = vmatpush1.bf16.msra.mxu0 0
    %336 = vmatprep.subr.bf16.mxu0 0
    %337 = vmatpush1.bf16.msra.mxu0 0
    %338 = vmatprep.mubr.bf16.mxu0 0
    %339 = vmatmul.mubr.bf16.gmra.mrb[0].mxu0 %v241
    %v340 = vpop.f32.mrb[0].mxu0
    %v341 = vadd.f32 %v292, %v340
    %v342 = vpop.f32.mrb[0].mxu0
    %v343 = vpop.f32.mrb[0].mxu0
    %v344 = vpop.f32.mrb[0].mxu0
    %345 = vdwg.mxu0
    %v346 = vand.u32 2147483647, %v341
    %v347 = vsub.f32 0.0, %v346
    %v348 = vmul.f32 %v216, 0.5
    %v349 = vmul.f32 %v348, 1.442695
    %v350 = vpow.pop %v349
    %v351 = vmul.f32 %v347, 0.5
    %v352 = vmul.f32 %v351, 1.442695
    %v353 = vpow.pop %v352
    %v354 = vadd.f32 %v216, 1.0
    %v355 = vmul.f32 %v147, %v147
    %v356 = vsub.f32 %v354, %v355
    %v357 = vmul.f32 %v350, %v350
    %v358 = vsub.f32 %v356, %v357
    %vm359 = vcmask 60416
    %v360 = vsel %vm359, %v358, 0.0
    %361 = vadd.xlane.f32.xlu0 %v360
    %v362 = vpop.xlane.xlu0 %361
    %v363 = vrot.slane %v362, 4
    %v364 = vadd.f32 %v362, %v363
    %v365 = vrot.slane %v364, 2
    %v366 = vadd.f32 %v364, %v365
    %v367 = vrot.slane %v366, 1
    %v368 = vadd.f32 %v366, %v367
    %s369 = vtos %v368
    %s370 = smul.f32 %s369, -0.5
    %s371 = smul.f32 %s370, 0.25
    %v372 = vadd.f32 %v347, 1.0
    %v373 = vmul.f32 %v278, %v278
    %v374 = vsub.f32 %v372, %v373
    %v375 = vmul.f32 %v353, %v353
    %v376 = vsub.f32 %v374, %v375
    %v377 = vsel %vm359, %v376, 0.0
    %378 = vadd.xlane.f32.xlu0 %v377
    %v379 = vpop.xlane.xlu0 %378
    %v380 = vrot.slane %v379, 4
    %v381 = vadd.f32 %v379, %v380
    %v382 = vrot.slane %v381, 2
    %v383 = vadd.f32 %v381, %v382
    %v384 = vrot.slane %v383, 1
    %v385 = vadd.f32 %v383, %v384
    %s386 = vtos %v385
    %s387 = smul.f32 %s386, -0.5
    %s388 = smul.f32 %s387, 0.25
    %s389 = sadd.f32 %s371, %s388
    %v390 = vld [vmem:[%s10] sm:$0xf]
    %v391 = vmul.f32 %v350, %v390
    %v392 = vadd.f32 %v147, %v391
    %v393 = vld [vmem:[%s11] sm:$0xf]
    %v394 = vmul.f32 %v353, %v393
    %v395 = vadd.f32 %v278, %v394
    %v396 = vpack.c.bf16 %v392, %v392
    %v397 = vld [vmem:[%s12] sm:$0xf]
    %v398 = vpack.c.bf16 %v395, %v395
    %v399 = vld [vmem:[%s13] sm:$0xf]
    %vm400 = vcmask 64512
    %v402 = vsel %vm400, %v398, 0
    %vm404 = vcmask 1043456
    %v406 = vsel %vm404, %v399, 0
    %408 = vmatprep.subr.bf16.mxu0 0
    %409 = vmatpush1.bf16.msra.mxu0 %v406
    %410 = vmatprep.subr.bf16.mxu0 0
    %411 = vmatpush1.bf16.msra.mxu0 0
    %412 = vmatprep.subr.bf16.mxu0 0
    %413 = vmatpush1.bf16.msra.mxu0 0
    %414 = vmatprep.subr.bf16.mxu0 0
    %415 = vmatpush1.bf16.msra.mxu0 0
    %416 = vmatprep.subr.bf16.mxu0 0
    %417 = vmatpush1.bf16.msra.mxu0 0
    %418 = vmatprep.subr.bf16.mxu0 0
    %419 = vmatpush1.bf16.msra.mxu0 0
    %420 = vmatprep.subr.bf16.mxu0 0
    %421 = vmatpush1.bf16.msra.mxu0 0
    %422 = vmatprep.subr.bf16.mxu0 0
    %423 = vmatpush1.bf16.msra.mxu0 0
    %424 = vmatprep.subr.bf16.mxu0 0
    %425 = vmatpush1.bf16.msra.mxu0 0
    %426 = vmatprep.subr.bf16.mxu0 0
    %427 = vmatpush1.bf16.msra.mxu0 0
    %428 = vmatprep.subr.bf16.mxu0 0
    %429 = vmatpush1.bf16.msra.mxu0 0
    %430 = vmatprep.subr.bf16.mxu0 0
    %431 = vmatpush1.bf16.msra.mxu0 0
    %432 = vmatprep.subr.bf16.mxu0 0
    %433 = vmatpush1.bf16.msra.mxu0 0
    %434 = vmatprep.subr.bf16.mxu0 0
    %435 = vmatpush1.bf16.msra.mxu0 0
    %436 = vmatprep.subr.bf16.mxu0 0
    %437 = vmatpush1.bf16.msra.mxu0 0
    %438 = vmatprep.subr.bf16.mxu0 0
    %439 = vmatpush1.bf16.msra.mxu0 0
    %440 = vmatprep.mubr.bf16.mxu0 0
    %441 = vmatmul.mubr.bf16.gmra.mrb[0].mxu0 %v402
    %v442 = vpop.f32.mrb[0].mxu0
    %v443 = vadd.f32 0.0, %v442
    %v444 = vpop.f32.mrb[0].mxu0
    %v445 = vpop.f32.mrb[0].mxu0
    %v446 = vpop.f32.mrb[0].mxu0
    %447 = vdwg.mxu0
    %v449 = vsel %vm400, %v396, 0
    %v452 = vsel %vm404, %v397, 0
    %454 = vmatprep.subr.bf16.mxu0 0
    %455 = vmatpush1.bf16.msra.mxu0 %v452
    %456 = vmatprep.subr.bf16.mxu0 0
    %457 = vmatpush1.bf16.msra.mxu0 0
    %458 = vmatprep.subr.bf16.mxu0 0
    %459 = vmatpush1.bf16.msra.mxu0 0
    %460 = vmatprep.subr.bf16.mxu0 0
    %461 = vmatpush1.bf16.msra.mxu0 0
    %462 = vmatprep.subr.bf16.mxu0 0
    %463 = vmatpush1.bf16.msra.mxu0 0
    %464 = vmatprep.subr.bf16.mxu0 0
    %465 = vmatpush1.bf16.msra.mxu0 0
    %466 = vmatprep.subr.bf16.mxu0 0
    %467 = vmatpush1.bf16.msra.mxu0 0
    %468 = vmatprep.subr.bf16.mxu0 0
    %469 = vmatpush1.bf16.msra.mxu0 0
    %470 = vmatprep.subr.bf16.mxu0 0
    %471 = vmatpush1.bf16.msra.mxu0 0
    %472 = vmatprep.subr.bf16.mxu0 0
    %473 = vmatpush1.bf16.msra.mxu0 0
    %474 = vmatprep.subr.bf16.mxu0 0
    %475 = vmatpush1.bf16.msra.mxu0 0
    %476 = vmatprep.subr.bf16.mxu0 0
    %477 = vmatpush1.bf16.msra.mxu0 0
    %478 = vmatprep.subr.bf16.mxu0 0
    %479 = vmatpush1.bf16.msra.mxu0 0
    %480 = vmatprep.subr.bf16.mxu0 0
    %481 = vmatpush1.bf16.msra.mxu0 0
    %482 = vmatprep.subr.bf16.mxu0 0
    %483 = vmatpush1.bf16.msra.mxu0 0
    %484 = vmatprep.subr.bf16.mxu0 0
    %485 = vmatpush1.bf16.msra.mxu0 0
    %486 = vmatprep.mubr.bf16.mxu0 0
    %487 = vmatmul.mubr.bf16.gmra.mrb[0].mxu0 %v449
    %v488 = vpop.f32.mrb[0].mxu0
    %v489 = vadd.f32 %v443, %v488
    %v490 = vpop.f32.mrb[0].mxu0
    %v491 = vpop.f32.mrb[0].mxu0
    %v492 = vpop.f32.mrb[0].mxu0
    %493 = vdwg.mxu0
    %v494 = vld [vmem:[%s14] sm:$0x1]
    %v496 = vlaneseq
    %v497 = vshrl.u32 %v496, 7
    %v498 = vsub.s32 0, %v497
    %v499 = vrot.slane %v494, %v498
    %v501 = vadd.f32 %v489, %v499
    %v502 = vtanh.pop %v501
    %v503 = vpack.c.bf16 %v502, %v502
    %v504 = vld [vmem:[%s15] sm:$0xf]
    %v505 = vld [vmem:[%s15 + $0x4] sm:$0xf]
    %v506 = vld [vmem:[%s15 + $0x8] sm:$0xf]
    %v507 = vld [vmem:[%s15 + $0xc] sm:$0xf]
    %v508 = vld [vmem:[%s16] sm:$0x1]
    %v510 = vlaneseq
    %v511 = vshrl.u32 %v510, 7
    %v512 = vsub.s32 0, %v511
    %v513 = vrot.slane %v508, %v512
    %v519 = vunpack.c.l.b16 %v504
    %v520 = vunpack.c.l.b16 %v505
    %v521 = vunpack.c.l.b16 %v506
    %v522 = vunpack.c.l.b16 %v507
    %v523 = vpack.c.b16 %v520, %v519
    %v524 = vpack.c.b16 %v522, %v521
    %v528 = vsel %vm108, %v503, 0
    %530 = vmatprep.subr.bf16.mxu0 0
    %531 = vmatpush1.bf16.msra.mxu0 %v523
    %532 = vmatprep.subr.bf16.mxu0 0
    %533 = vmatpush1.bf16.msra.mxu0 %v524
    %534 = vmatprep.subr.bf16.mxu0 0
    %535 = vmatpush1.bf16.msra.mxu0 0
    %536 = vmatprep.subr.bf16.mxu0 0
    %537 = vmatpush1.bf16.msra.mxu0 0
    %538 = vmatprep.subr.bf16.mxu0 0
    %539 = vmatpush1.bf16.msra.mxu0 0
    %540 = vmatprep.subr.bf16.mxu0 0
    %541 = vmatpush1.bf16.msra.mxu0 0
    %542 = vmatprep.subr.bf16.mxu0 0
    %543 = vmatpush1.bf16.msra.mxu0 0
    %544 = vmatprep.subr.bf16.mxu0 0
    %545 = vmatpush1.bf16.msra.mxu0 0
    %546 = vmatprep.subr.bf16.mxu0 0
    %547 = vmatpush1.bf16.msra.mxu0 0
    %548 = vmatprep.subr.bf16.mxu0 0
    %549 = vmatpush1.bf16.msra.mxu0 0
    %550 = vmatprep.subr.bf16.mxu0 0
    %551 = vmatpush1.bf16.msra.mxu0 0
    %552 = vmatprep.subr.bf16.mxu0 0
    %553 = vmatpush1.bf16.msra.mxu0 0
    %554 = vmatprep.subr.bf16.mxu0 0
    %555 = vmatpush1.bf16.msra.mxu0 0
    %556 = vmatprep.subr.bf16.mxu0 0
    %557 = vmatpush1.bf16.msra.mxu0 0
    %558 = vmatprep.subr.bf16.mxu0 0
    %559 = vmatpush1.bf16.msra.mxu0 0
    %560 = vmatprep.subr.bf16.mxu0 0
    %561 = vmatpush1.bf16.msra.mxu0 0
    %562 = vmatprep.mubr.bf16.mxu0 0
    %563 = vmatmul.mubr.bf16.gmra.mrb[0].mxu0 %v528
    %v564 = vpop.f32.mrb[0].mxu0
    %v565 = vadd.f32 %v513, %v564
    %v566 = vpop.f32.mrb[0].mxu0
    %v567 = vpop.f32.mrb[0].mxu0
    %v568 = vpop.f32.mrb[0].mxu0
    %569 = vdwg.mxu0
    %v570 = vld [vmem:[%s17] sm:$0xf]
    %v571 = vsub.f32 %v565, %v570
    %v572 = vmul.f32 %v571, %v571
    %vm573 = vcmask 11264
    %v574 = vsel %vm573, %v572, 0.0
    %575 = vadd.xlane.f32.xlu0 %v574
    %v576 = vpop.xlane.xlu0 %575
    %v577 = vrot.slane %v576, 4
    %v578 = vadd.f32 %v576, %v577
    %v579 = vrot.slane %v578, 2
    %v580 = vadd.f32 %v578, %v579
    %v581 = vrot.slane %v580, 1
    %v582 = vadd.f32 %v580, %v581
    %s583 = vtos %v582
    %v584 = vrcp.pop 8.0
    %s585 = vtos %v584
    %s586 = smul.f32 %s583, %s585
    %v587 = vld [vmem:[%s18] sm:$0xf]
    %v589 = vsel %vm404, %v587, 0
    %591 = vmatprep.subr.bf16.mxu0 0
    %592 = vmatpush1.bf16.msra.mxu0 %v589
    %593 = vmatprep.subr.bf16.mxu0 0
    %594 = vmatpush1.bf16.msra.mxu0 0
    %595 = vmatprep.subr.bf16.mxu0 0
    %596 = vmatpush1.bf16.msra.mxu0 0
    %597 = vmatprep.subr.bf16.mxu0 0
    %598 = vmatpush1.bf16.msra.mxu0 0
    %599 = vmatprep.subr.bf16.mxu0 0
    %600 = vmatpush1.bf16.msra.mxu0 0
    %601 = vmatprep.subr.bf16.mxu0 0
    %602 = vmatpush1.bf16.msra.mxu0 0
    %603 = vmatprep.subr.bf16.mxu0 0
    %604 = vmatpush1.bf16.msra.mxu0 0
    %605 = vmatprep.subr.bf16.mxu0 0
    %606 = vmatpush1.bf16.msra.mxu0 0
    %607 = vmatprep.subr.bf16.mxu0 0
    %608 = vmatpush1.bf16.msra.mxu0 0
    %609 = vmatprep.subr.bf16.mxu0 0
    %610 = vmatpush1.bf16.msra.mxu0 0
    %611 = vmatprep.subr.bf16.mxu0 0
    %612 = vmatpush1.bf16.msra.mxu0 0
    %613 = vmatprep.subr.bf16.mxu0 0
    %614 = vmatpush1.bf16.msra.mxu0 0
    %615 = vmatprep.subr.bf16.mxu0 0
    %616 = vmatpush1.bf16.msra.mxu0 0
    %617 = vmatprep.subr.bf16.mxu0 0
    %618 = vmatpush1.bf16.msra.mxu0 0
    %619 = vmatprep.subr.bf16.mxu0 0
    %620 = vmatpush1.bf16.msra.mxu0 0
    %621 = vmatprep.subr.bf16.mxu0 0
    %622 = vmatpush1.bf16.msra.mxu0 0
    %623 = vmatprep.mubr.bf16.mxu0 0
    %624 = vmatmul.mubr.bf16.gmra.mrb[0].mxu0 %v402
    %v625 = vpop.f32.mrb[0].mxu0
    %v626 = vadd.f32 0.0, %v625
    %v627 = vpop.f32.mrb[0].mxu0
    %v628 = vpop.f32.mrb[0].mxu0
    %v629 = vpop.f32.mrb[0].mxu0
    %630 = vdwg.mxu0
    %v631 = vpack.c.bf16 %v626, %v626
    %v632 = vld [vmem:[%s19] sm:$0xf]
    %v633 = vld [vmem:[%s19 + $0x4] sm:$0xf]
    %v634 = vld [vmem:[%s19 + $0x8] sm:$0xf]
    %v635 = vld [vmem:[%s19 + $0xc] sm:$0xf]
    %v640 = vunpack.c.l.b16 %v632
    %v641 = vunpack.c.l.b16 %v633
    %v642 = vunpack.c.l.b16 %v634
    %v643 = vunpack.c.l.b16 %v635
    %v644 = vpack.c.b16 %v641, %v640
    %v645 = vpack.c.b16 %v643, %v642
    %v649 = vsel %vm108, %v631, 0
    %651 = vmatprep.subr.bf16.mxu0 0
    %652 = vmatpush1.bf16.msra.mxu0 %v644
    %653 = vmatprep.subr.bf16.mxu0 0
    %654 = vmatpush1.bf16.msra.mxu0 %v645
    %655 = vmatprep.subr.bf16.mxu0 0
    %656 = vmatpush1.bf16.msra.mxu0 0
    %657 = vmatprep.subr.bf16.mxu0 0
    %658 = vmatpush1.bf16.msra.mxu0 0
    %659 = vmatprep.subr.bf16.mxu0 0
    %660 = vmatpush1.bf16.msra.mxu0 0
    %661 = vmatprep.subr.bf16.mxu0 0
    %662 = vmatpush1.bf16.msra.mxu0 0
    %663 = vmatprep.subr.bf16.mxu0 0
    %664 = vmatpush1.bf16.msra.mxu0 0
    %665 = vmatprep.subr.bf16.mxu0 0
    %666 = vmatpush1.bf16.msra.mxu0 0
    %667 = vmatprep.subr.bf16.mxu0 0
    %668 = vmatpush1.bf16.msra.mxu0 0
    %669 = vmatprep.subr.bf16.mxu0 0
    %670 = vmatpush1.bf16.msra.mxu0 0
    %671 = vmatprep.subr.bf16.mxu0 0
    %672 = vmatpush1.bf16.msra.mxu0 0
    %673 = vmatprep.subr.bf16.mxu0 0
    %674 = vmatpush1.bf16.msra.mxu0 0
    %675 = vmatprep.subr.bf16.mxu0 0
    %676 = vmatpush1.bf16.msra.mxu0 0
    %677 = vmatprep.subr.bf16.mxu0 0
    %678 = vmatpush1.bf16.msra.mxu0 0
    %679 = vmatprep.subr.bf16.mxu0 0
    %680 = vmatpush1.bf16.msra.mxu0 0
    %681 = vmatprep.subr.bf16.mxu0 0
    %682 = vmatpush1.bf16.msra.mxu0 0
    %683 = vmatprep.mubr.bf16.mxu0 0
    %684 = vmatmul.mubr.bf16.gmra.mrb[0].mxu0 %v649
    %v685 = vpop.f32.mrb[0].mxu0
    %v686 = vadd.f32 0.0, %v685
    %v687 = vpop.f32.mrb[0].mxu0
    %v688 = vpop.f32.mrb[0].mxu0
    %v689 = vpop.f32.mrb[0].mxu0
    %690 = vdwg.mxu0
    %v691 = vlaneseq
    %v692 = vshrl.u32 %v691, 7
    %v693 = vld [vmem:[%s20] sm:$0x1]
    %v694 = vlaneseq
    %v695 = vshrl.u32 %v694, 7
    %v696 = vsub.s32 0, %v695
    %v697 = vrot.slane %v693, %v696
    %vm698 = vcmp.eq.s32.totalorder %v697, %v692
    %v699 = vsel %vm698, %v686, 0.0
    %vm700 = vcmask 93184
    %v701 = vsel %vm700, %v699, 0.0
    %v702 = vrot.slane %v701, 4
    %v703 = vadd.f32 %v701, %v702
    %v704 = vrot.slane %v703, 2
    %v705 = vadd.f32 %v703, %v704
    %v706 = vrot.slane %v705, 1
    %v707 = vadd.f32 %v705, %v706
    %v708 = vlaneseq
    %v709 = vand.u32 %v708, 127
    %v710 = vld [vmem:[%s21] sm:$0x1]
    %v711 = vlaneseq
    %v712 = vshrl.u32 %v711, 7
    %v713 = vsub.s32 0, %v712
    %v714 = vrot.slane %v710, %v713
    %vm715 = vcmp.eq.s32.totalorder %v714, %v692
    %v716 = vsel %vm715, %v707, -1e+30
    %vm717 = vcmask 92160
    %v718 = vsel %vm717, %v716, -inf
    %719 = vmax.xlane.f32.xlu0 %v718
    %v720 = vpop.xlane.xlu0 %719
    %v721 = vsub.f32 %v716, %v720
    %v722 = vmul.f32 %v721, 1.442695
    %v723 = vpow.pop %v722
    %v724 = vsel %vm715, %v723, 0.0
    %v725 = vsel %vm717, %v724, 0.0
    %726 = vadd.xlane.f32.xlu0 %v725
    %v727 = vpop.xlane.xlu0 %726
    %v728 = vlog2.pop %v727
    %v729 = vmul.f32 %v728, 0.6931472
    %v730 = vadd.f32 %v720, %v729
    %v731 = vld [vmem:[%s22] sm:$0x7]
    %732 = vset.pattern.permute.xlu0 0
    %733 = vperm.xlu0 %732, %v731
    %v734 = vpop.permute.xlu0 %733
    %vm735 = vcmp.eq.s32.totalorder %v709, %v734
    %v736 = vsel %vm735, %v707, 0.0
    %v737 = vsel %vm717, %v736, 0.0
    %738 = vadd.xlane.f32.xlu0 %v737
    %v739 = vpop.xlane.xlu0 %738
    %v740 = vsub.f32 %v730, %v739
    %vm741 = vcmask 2048
    %v742 = vsel %vm741, %v740, 0.0
    %743 = vadd.xlane.f32.xlu0 %v742
    %v744 = vpop.xlane.xlu0 %743
    %v745 = vrot.slane %v744, 4
    %v746 = vadd.f32 %v744, %v745
    %v747 = vrot.slane %v746, 2
    %v748 = vadd.f32 %v746, %v747
    %v749 = vrot.slane %v748, 1
    %v750 = vadd.f32 %v748, %v749
    %s751 = vtos %v750
    %s752 = smul.f32 %s751, 0.25
    %vm753 = vcmp.ge.f32.partialorder %v739, %v720
    %v754 = vsel %vm753, 1, 0
    %v755 = vcvt.s32.f32 %v754
    %v756 = vsel %vm741, %v755, 0.0
    %757 = vadd.xlane.f32.xlu0 %v756
    %v758 = vpop.xlane.xlu0 %757
    %v759 = vrot.slane %v758, 4
    %v760 = vadd.f32 %v758, %v759
    %v761 = vrot.slane %v760, 2
    %v762 = vadd.f32 %v760, %v761
    %v763 = vrot.slane %v762, 1
    %v764 = vadd.f32 %v762, %v763
    %s765 = vtos %v764
    %v766 = vrcp.pop 3.0
    %s767 = vtos %v766
    %s768 = smul.f32 %s765, %s767
    %v769 = vld [vmem:[#allocation2] sm:$0x1]
    %v770 = vstv %s389
    %v771 = vmul.f32 %v769, %v770
    %v772 = vstv %s752
    %v773 = vadd.f32 %v772, %v771
    %v774 = vstv %s586
    %v775 = vadd.f32 %v773, %v774
    %vm776 = vcmp.eq.s32.totalorder %v709, 0
    %778 = vset.pattern.permute.xlu0 0
    %779 = vperm.xlu0 %778, %v775
    %v780 = vpop.permute.xlu0 %779
    %v782 = vlaneseq
    %v783 = vshrl.u32 %v782, 7
    %v784 = vsub.s32 0, %v783
    %v785 = vrot.slane %v780, %v784
    %v786 = vsel %vm776, %v785, 0.0
    %vm787 = vcmp.eq.s32.totalorder %v709, 1
    %v788 = vsel %vm787, %v770, 0.0
    %v789 = vadd.f32 %v786, %v788
    %vm790 = vcmp.eq.s32.totalorder %v709, 2
    %v791 = vsel %vm790, %v774, 0.0
    %v792 = vadd.f32 %v789, %v791
    %vm793 = vcmp.eq.s32.totalorder %v709, 3
    %v794 = vsel %vm793, %v772, 0.0
    %v795 = vadd.f32 %v792, %v794
    %vm796 = vcmp.eq.s32.totalorder %v709, 4
    %v797 = vstv %s768
    %v798 = vsel %vm796, %v797, 0.0
    %v799 = vadd.f32 %v795, %v798
    %vm800 = vcmask 57344
    %801 = vst.msk [vmem:[#allocation3] sm:$0x1] %vm800, %v799
    // Predicated region
    $region98: #{_fused_head.1} parent=1 // pred_check
      _
    $region99: #{_fused_head.1} parent=1 // pred_check_branch
      %803 = sbr.rel (0) target = $region101
    $region100: #{_fused_head.1} parent=1 // pred_region
      %s805 = ssub.s32 16, 16
      %806 = vsyncadd [#allocation4], %s805
      %s808 = sshll.u32 [#allocation3], 4
      %s809 = int_to_ptr.vmem [resolvable:$true] %s808
      %811 = dma.vmem_to_hbm [thread:$0]  %s809, 16, %s24, [#allocation4]
    $region101: #{_fused_head.1} parent=1 // pred_fallthru
      _
    // Predicated region
    $region102: #{_fused_head.1} parent=1 // pred_check
      _
    $region103: #{_fused_head.1} parent=1 // pred_check_branch
      %813 = sbr.rel (0) target = $region105
    $region104: #{_fused_head.1} parent=1 // pred_region
      %814 = dma.done [#allocation4], 16
    $region105: #{_fused_head.1} parent=1 // pred_fallthru
      _
    %815 = vsyncpa [#allocation4], 1

</llo_original>
